<compile_context>
chip_gen: v7x
topology: tpu7x:2x2x1
jax: 0.10.0
libtpu: 0.0.40
codegen_flags: <defaults>
</compile_context>

<pallas_src>
import functools

import numpy as np
import jax
import jax.numpy as jnp
from jax.experimental import pallas as pl
from jax.experimental.pallas import tpu as pltpu


NEG_SLOPE = 0.01  # nn.LeakyReLU default


def _leaky_relu(x):
    return jnp.where(x > 0, x, NEG_SLOPE * x)


def _round_up(x, m):
    return ((x + m - 1) // m) * m


# --------------------------------------------------------------------------
# Kernel
# --------------------------------------------------------------------------
def dense_ffn_kernel(u_ref, a_ref,
                     w1a_ref, w1b_ref, b1_ref,
                     w2a_ref, w2b_ref, w2c_ref, b2_ref,
                     w3a_ref, w3b_ref, w3c_ref, w3d_ref, b3_ref,
                     o_ref):
    """One (tm, E)+(tm, E) row tile through the three dense layers.

    l1 = LReLU([u, a]        @ W1 + b1)   -> u@W1a + a@W1b
    l2 = LReLU([u, a, l1]    @ W2 + b2)   -> u@W2a + a@W2b + l1@W2c
    o  = LReLU([u, a, l1, l2]@ W3 + b3)   -> u@W3a + a@W3b + l1@W3c + l2@W3d
    All dots accumulate in f32 on the MXU; bias + LeakyReLU stay in f32; the
    activation is cast to the weight (compute) dtype in a single fused
    expression per layer (no separate f32/bf16 copies kept live).
    """
    f32 = jnp.float32
    cdt = w1a_ref.dtype                      # compute (matmul-operand) dtype
    u = u_ref[...].astype(cdt)
    a = a_ref[...].astype(cdt)

    l1 = _leaky_relu(
        jnp.dot(u, w1a_ref[...], preferred_element_type=f32)
        + jnp.dot(a, w1b_ref[...], preferred_element_type=f32)
        + b1_ref[...]).astype(cdt)

    l2 = _leaky_relu(
        jnp.dot(u, w2a_ref[...], preferred_element_type=f32)
        + jnp.dot(a, w2b_ref[...], preferred_element_type=f32)
        + jnp.dot(l1, w2c_ref[...], preferred_element_type=f32)
        + b2_ref[...]).astype(cdt)

    y3 = (jnp.dot(u, w3a_ref[...], preferred_element_type=f32)
          + jnp.dot(a, w3b_ref[...], preferred_element_type=f32)
          + jnp.dot(l1, w3c_ref[...], preferred_element_type=f32)
          + jnp.dot(l2, w3d_ref[...], preferred_element_type=f32)
          + b3_ref[...])
    o_ref[...] = _leaky_relu(y3).astype(o_ref.dtype)


# --------------------------------------------------------------------------
# One-time parameter preparation (hoisted out of the per-call path)
# --------------------------------------------------------------------------
def prepare_dense_ffn_params(params, compute_dtype=jnp.bfloat16):
    """Split each weight into its row-slabs, pad hidden widths to multiples of
    128 (zero columns + matching zero rows downstream), cast weights to the
    compute dtype and biases to f32. Run once; pass the result to dense_ffn."""
    w1, b1, w2, b2, w3, b3 = params
    E = w1.shape[0] // 2
    d1 = w1.shape[1]                      # 2E + G
    d2 = w2.shape[1]                      # 4E + 2G
    d3 = w3.shape[1]                      # E
    assert w1.shape[0] == 2 * E
    assert w2.shape[0] == 2 * E + d1      # forward() dataflow (see TODO above)
    assert w3.shape[0] == 2 * E + d1 + d2

    d1p = _round_up(d1, 128)
    d2p = _round_up(d2, 128)

    def pad_cols(x, w):
        return jnp.pad(x, ((0, 0), (0, w - x.shape[1])))

    def pad_rows(x, h):
        return jnp.pad(x, ((0, h - x.shape[0]), (0, 0)))

    cdt, f32 = compute_dtype, jnp.float32

    w1a = pad_cols(w1[:E], d1p).astype(cdt)
    w1b = pad_cols(w1[E:2 * E], d1p).astype(cdt)
    b1p = pad_cols(jnp.reshape(b1, (1, d1)), d1p).astype(f32)

    w2a = pad_cols(w2[:E], d2p).astype(cdt)
    w2b = pad_cols(w2[E:2 * E], d2p).astype(cdt)
    w2c = pad_cols(pad_rows(w2[2 * E:2 * E + d1], d1p), d2p).astype(cdt)
    b2p = pad_cols(jnp.reshape(b2, (1, d2)), d2p).astype(f32)

    w3a = w3[:E].astype(cdt)
    w3b = w3[E:2 * E].astype(cdt)
    w3c = pad_rows(w3[2 * E:2 * E + d1], d1p).astype(cdt)
    w3d = pad_rows(w3[2 * E + d1:], d2p).astype(cdt)
    b3p = jnp.reshape(b3, (1, d3)).astype(f32)

    return (w1a, w1b, b1p, w2a, w2b, w2c, b2p, w3a, w3b, w3c, w3d, b3p)


# --------------------------------------------------------------------------
# Wrapper / pallas_call construction
# --------------------------------------------------------------------------
@functools.lru_cache(maxsize=None)
def _vmem_limit_bytes():
    """Generation-aware VMEM budget: physical capacity minus ~16 MiB headroom
    (v5e/v6e 128 MiB -> 112 MiB, v7x 64 MiB -> 48 MiB)."""
    try:
        cap = int(pltpu.get_tpu_info().vmem_capacity_bytes)
    except Exception:  # hardware query unavailable on this build: be conservative
        cap = 64 * 1024 * 1024
    return max(32 * 1024 * 1024, cap - 16 * 1024 * 1024)


@functools.partial(jax.jit, static_argnames=("tm", "out_dtype", "vmem_limit"))
def _dense_ffn_impl(unattended, attended, prepared, *, tm, out_dtype, vmem_limit):
    B, S, E = unattended.shape
    N = B * S
    (w1a, w1b, b1p, w2a, w2b, w2c, b2p, w3a, w3b, w3c, w3d, b3p) = prepared
    d1p = w1a.shape[1]
    d2p = w2a.shape[1]
    d3 = w3a.shape[1]                      # == E

    # Two lane-contiguous (N, E) row streams (no concat, no wrapper cast).
    u = unattended.reshape(N, E)
    a = attended.reshape(N, E)

    # Row tile: multiple of 8, capped so there are >= 2 grid steps; pad the row
    # count to an EVEN number of steps (both v7x TCs busy; at most one wasted
    # tile on single-TC v5e/v6e).
    tm_eff = min(tm, max(8, _round_up(pl.cdiv(N, 2), 8)))
    tm_eff = _round_up(tm_eff, 8)
    n_pad = _round_up(N, 2 * tm_eff)
    if n_pad != N:
        u = jnp.pad(u, ((0, n_pad - N), (0, 0)))
        a = jnp.pad(a, ((0, n_pad - N), (0, 0)))

    def row_spec(d):
        # Default Buffered(2) pipelining: per-step row DMA is fully hidden.
        return pl.BlockSpec((tm_eff, d), lambda i: (i, 0))

    def resident_spec():
        # Whole array, single-buffered, DMA'd into VMEM once for the kernel.
        return pl.BlockSpec(memory_space=pltpu.MemorySpace.VMEM)

    in_specs = [row_spec(E), row_spec(E)] + [resident_spec() for _ in range(12)]
    out_specs = row_spec(d3)

    weight_bytes = sum(int(p.size) * p.dtype.itemsize for p in prepared)
    flops = 2 * n_pad * (2 * E * d1p
                         + (2 * E + d1p) * d2p
                         + (2 * E + d1p + d2p) * d3)
    bytes_accessed = (n_pad * 2 * E * unattended.dtype.itemsize
                      + n_pad * d3 * np.dtype(out_dtype).itemsize
                      + weight_bytes)

    call = pl.pallas_call(
        dense_ffn_kernel,
        out_shape=jax.ShapeDtypeStruct((n_pad, d3), out_dtype),
        grid_spec=pltpu.PrefetchScalarGridSpec(
            num_scalar_prefetch=0,
            grid=(n_pad // tm_eff,),
            in_specs=in_specs,
            out_specs=out_specs,
        ),
        compiler_params=pltpu.CompilerParams(
            dimension_semantics=("parallel",),
            vmem_limit_bytes=vmem_limit),
        cost_estimate=pl.CostEstimate(flops=flops, transcendentals=0,
                                      bytes_accessed=bytes_accessed),
    )
    out = call(u, a, *prepared)
    # NOTE: for toy E < 128 the output tiles use lane-masked stores; realistic
    # E >= 128 is naturally lane-dense.
    return out[:N].reshape(B, S, E)


def dense_ffn(unattended, attended, prepared_params, *, tm=256, out_dtype=None):
    """unattended, attended: (B, S, E). `prepared_params` comes from
    prepare_dense_ffn_params (weights already split/padded/cast — the cast is
    NOT redone per call). Returns (B, S, E) in `out_dtype` (default: input
    dtype; pass bf16 on v5e if downstream accepts it to halve writeback)."""
    if out_dtype is None:
        out_dtype = unattended.dtype
    return _dense_ffn_impl(unattended, attended, prepared_params,
                           tm=tm, out_dtype=np.dtype(out_dtype),
                           vmem_limit=_vmem_limit_bytes())


# --------------------------------------------------------------------------
# Init + pure-JAX reference
# --------------------------------------------------------------------------
def init_dense_ffn_params(key, embed_dim, growth_rate=32, dtype=jnp.float32):
    """Deterministic init; (in_features, out_features) layout, shapes follow
    the forward() dataflow (see TODO at top)."""
    E, G = embed_dim, growth_rate
    dims = [
        (2 * E,         2 * E + G),        # layer1
        (4 * E + G,     4 * E + 2 * G),    # layer2 (in_features per forward())
        (8 * E + 3 * G, E),                # layer3
    ]
    params = []
    for (din, dout) in dims:
        key, kw, kb = jax.random.split(key, 3)
        bound = 1.0 / float(np.sqrt(din))
        w = jax.random.uniform(kw, (din, dout), dtype, -bound, bound)
        b = jax.random.uniform(kb, (1, dout), dtype, -bound, bound)
        params += [w, b]
    return tuple(params)


def dense_ffn_reference(unattended, attended, params,
                        compute_dtype=jnp.float32):
    """Pure-JAX reference of the PyTorch forward(). compute_dtype=bf16 mirrors
    the kernel's mixed precision; f32 is the exact original-module semantics."""
    w1, b1, w2, b2, w3, b3 = params

    def lin(x, w, b):
        y = jnp.dot(x.astype(compute_dtype), w.astype(compute_dtype),
                    preferred_element_type=jnp.float32)
        return _leaky_relu(y + jnp.reshape(b, (1, -1)).astype(jnp.float32))

    l1_in = jnp.concatenate([unattended, attended], axis=-1).astype(jnp.float32)
    l1_out = lin(l1_in, w1, b1)
    l2_in = jnp.concatenate([l1_in, l1_out], axis=-1)
    l2_out = lin(l2_in, w2, b2)
    l3_in = jnp.concatenate([l2_in, l2_out], axis=-1)
    return lin(l3_in, w3, b3)


# --------------------------------------------------------------------------
# Self-test
# --------------------------------------------------------------------------
if __name__ == "__main__":
    B, S, E, G = 2, 8, 32, 32

    key = jax.random.PRNGKey(0)
    k_u, k_a, k_p = jax.random.split(key, 3)
    unattended = jax.random.normal(k_u, (B, S, E), jnp.float32)
    attended = jax.random.normal(k_a, (B, S, E), jnp.float32)
    params = init_dense_ffn_params(k_p, E, G)

    prepared = prepare_dense_ffn_params(params, compute_dtype=jnp.bfloat16)
    out = dense_ffn(unattended, attended, prepared, tm=256)
    out = jax.block_until_ready(out)

    ref_mixed = dense_ffn_reference(unattended, attended, params,
                                    compute_dtype=jnp.bfloat16)
    ref_exact = dense_ffn_reference(unattended, attended, params,
                                    compute_dtype=jnp.float32)

    assert out.shape == (B, S, E) and out.dtype == unattended.dtype
    out_f = out.astype(jnp.float32)
    # Tight check vs the matched mixed-precision reference (same bf16 operand
    # rounding, f32 accumulation); loose sanity check vs exact-f32 semantics
    # (bf16 operand rounding is a deliberate precision trade-off).
    assert jnp.allclose(out_f, ref_mixed, atol=2e-3, rtol=2e-3), \
        "mismatch vs mixed-precision reference"
    assert jnp.allclose(out_f, ref_exact, atol=1e-1, rtol=1e-1), \
        "mismatch vs f32 reference"

    print("KERNEL_OK")
</pallas_src>

<mosaic_0001>
module attributes {stable_mosaic.version = 11 : i64} {
  func.func @dense_ffn_kernel(%arg0: i32, %arg1: memref<8x32xf32, #tpu.memory_space<vmem>>, %arg2: memref<8x32xf32, #tpu.memory_space<vmem>>, %arg3: memref<32x128xbf16, #tpu.memory_space<vmem>>, %arg4: memref<32x128xbf16, #tpu.memory_space<vmem>>, %arg5: memref<1x128xf32, #tpu.memory_space<vmem>>, %arg6: memref<32x256xbf16, #tpu.memory_space<vmem>>, %arg7: memref<32x256xbf16, #tpu.memory_space<vmem>>, %arg8: memref<128x256xbf16, #tpu.memory_space<vmem>>, %arg9: memref<1x256xf32, #tpu.memory_space<vmem>>, %arg10: memref<32x32xbf16, #tpu.memory_space<vmem>>, %arg11: memref<32x32xbf16, #tpu.memory_space<vmem>>, %arg12: memref<128x32xbf16, #tpu.memory_space<vmem>>, %arg13: memref<256x32xbf16, #tpu.memory_space<vmem>>, %arg14: memref<1x32xf32, #tpu.memory_space<vmem>>, %arg15: memref<8x32xf32, #tpu.memory_space<vmem>>) attributes {dimension_semantics = [#tpu.dimension_semantics<parallel>], iteration_bounds = array<i64: 2>, scalar_prefetch = 0 : i64, scratch_operands = 0 : i64, tpu.core_type = #tpu.core_type<tc>, window_params = [{transform_indices = @transform_0, window_bounds = array<i64: 8, 32>}, {transform_indices = @transform_1, window_bounds = array<i64: 8, 32>}, {pipeline_mode = #tpu.pipeline_mode<synchronous>, transform_indices = @transform_2, window_bounds = array<i64: 32, 128>}, {pipeline_mode = #tpu.pipeline_mode<synchronous>, transform_indices = @transform_3, window_bounds = array<i64: 32, 128>}, {pipeline_mode = #tpu.pipeline_mode<synchronous>, transform_indices = @transform_4, window_bounds = array<i64: 1, 128>}, {pipeline_mode = #tpu.pipeline_mode<synchronous>, transform_indices = @transform_5, window_bounds = array<i64: 32, 256>}, {pipeline_mode = #tpu.pipeline_mode<synchronous>, transform_indices = @transform_6, window_bounds = array<i64: 32, 256>}, {pipeline_mode = #tpu.pipeline_mode<synchronous>, transform_indices = @transform_7, window_bounds = array<i64: 128, 256>}, {pipeline_mode = #tpu.pipeline_mode<synchronous>, transform_indices = @transform_8, window_bounds = array<i64: 1, 256>}, {pipeline_mode = #tpu.pipeline_mode<synchronous>, transform_indices = @transform_9, window_bounds = array<i64: 32, 32>}, {pipeline_mode = #tpu.pipeline_mode<synchronous>, transform_indices = @transform_10, window_bounds = array<i64: 32, 32>}, {pipeline_mode = #tpu.pipeline_mode<synchronous>, transform_indices = @transform_11, window_bounds = array<i64: 128, 32>}, {pipeline_mode = #tpu.pipeline_mode<synchronous>, transform_indices = @transform_12, window_bounds = array<i64: 256, 32>}, {pipeline_mode = #tpu.pipeline_mode<synchronous>, transform_indices = @transform_13, window_bounds = array<i64: 1, 32>}, {transform_indices = @transform_14, window_bounds = array<i64: 8, 32>}]} {
    %c0 = arith.constant 0 : index
    %c0_0 = arith.constant 0 : index
    %0 = vector.load %arg1[%c0, %c0_0] : memref<8x32xf32, #tpu.memory_space<vmem>>, vector<8x32xf32>
    %1 = arith.truncf %0 : vector<8x32xf32> to vector<8x32xbf16>
    %c0_1 = arith.constant 0 : index
    %c0_2 = arith.constant 0 : index
    %2 = vector.load %arg2[%c0_1, %c0_2] : memref<8x32xf32, #tpu.memory_space<vmem>>, vector<8x32xf32>
    %3 = arith.truncf %2 : vector<8x32xf32> to vector<8x32xbf16>
    %c0_3 = arith.constant 0 : index
    %c0_4 = arith.constant 0 : index
    %4 = vector.load %arg3[%c0_3, %c0_4] : memref<32x128xbf16, #tpu.memory_space<vmem>>, vector<32x128xbf16>
    %cst = arith.constant dense<0.000000e+00> : vector<8x128xf32>
    %5 = tpu.matmul %1, %4, %cst {dimension_numbers = #tpu.dot_dimension_numbers<[1], [0], [0], [1], [0, 0, 1, 1], [], []>} : vector<8x32xbf16>, vector<32x128xbf16>, vector<8x128xf32> -> vector<8x128xf32>
    %c0_5 = arith.constant 0 : index
    %c0_6 = arith.constant 0 : index
    %6 = vector.load %arg4[%c0_5, %c0_6] : memref<32x128xbf16, #tpu.memory_space<vmem>>, vector<32x128xbf16>
    %cst_7 = arith.constant dense<0.000000e+00> : vector<8x128xf32>
    %7 = tpu.matmul %3, %6, %cst_7 {dimension_numbers = #tpu.dot_dimension_numbers<[1], [0], [0], [1], [0, 0, 1, 1], [], []>} : vector<8x32xbf16>, vector<32x128xbf16>, vector<8x128xf32> -> vector<8x128xf32>
    %8 = arith.addf %5, %7 : vector<8x128xf32>
    %c0_8 = arith.constant 0 : index
    %c0_9 = arith.constant 0 : index
    %9 = vector.load %arg5[%c0_8, %c0_9] : memref<1x128xf32, #tpu.memory_space<vmem>>, vector<1x128xf32>
    %10 = vector.broadcast %9 : vector<1x128xf32> to vector<8x128xf32>
    %11 = arith.addf %8, %10 : vector<8x128xf32>
    %cst_10 = arith.constant 0.000000e+00 : f32
    %12 = vector.broadcast %cst_10 : f32 to vector<8x128xf32>
    %13 = arith.cmpf ogt, %11, %12 : vector<8x128xf32>
    %cst_11 = arith.constant 0.00999999977 : f32
    %14 = vector.broadcast %cst_11 : f32 to vector<8x128xf32>
    %15 = arith.mulf %14, %11 : vector<8x128xf32>
    %16 = arith.select %13, %11, %15 : vector<8x128xi1>, vector<8x128xf32>
    %17 = arith.truncf %16 : vector<8x128xf32> to vector<8x128xbf16>
    %c0_12 = arith.constant 0 : index
    %c0_13 = arith.constant 0 : index
    %18 = vector.load %arg6[%c0_12, %c0_13] : memref<32x256xbf16, #tpu.memory_space<vmem>>, vector<32x256xbf16>
    %cst_14 = arith.constant dense<0.000000e+00> : vector<8x256xf32>
    %19 = tpu.matmul %1, %18, %cst_14 {dimension_numbers = #tpu.dot_dimension_numbers<[1], [0], [0], [1], [0, 0, 1, 1], [], []>} : vector<8x32xbf16>, vector<32x256xbf16>, vector<8x256xf32> -> vector<8x256xf32>
    %c0_15 = arith.constant 0 : index
    %c0_16 = arith.constant 0 : index
    %20 = vector.load %arg7[%c0_15, %c0_16] : memref<32x256xbf16, #tpu.memory_space<vmem>>, vector<32x256xbf16>
    %cst_17 = arith.constant dense<0.000000e+00> : vector<8x256xf32>
    %21 = tpu.matmul %3, %20, %cst_17 {dimension_numbers = #tpu.dot_dimension_numbers<[1], [0], [0], [1], [0, 0, 1, 1], [], []>} : vector<8x32xbf16>, vector<32x256xbf16>, vector<8x256xf32> -> vector<8x256xf32>
    %22 = arith.addf %19, %21 : vector<8x256xf32>
    %c0_18 = arith.constant 0 : index
    %c0_19 = arith.constant 0 : index
    %23 = vector.load %arg8[%c0_18, %c0_19] : memref<128x256xbf16, #tpu.memory_space<vmem>>, vector<128x256xbf16>
    %cst_20 = arith.constant dense<0.000000e+00> : vector<8x256xf32>
    %24 = tpu.matmul %17, %23, %cst_20 {dimension_numbers = #tpu.dot_dimension_numbers<[1], [0], [0], [1], [0, 0, 1, 1], [], []>} : vector<8x128xbf16>, vector<128x256xbf16>, vector<8x256xf32> -> vector<8x256xf32>
    %25 = arith.addf %22, %24 : vector<8x256xf32>
    %c0_21 = arith.constant 0 : index
    %c0_22 = arith.constant 0 : index
    %26 = vector.load %arg9[%c0_21, %c0_22] : memref<1x256xf32, #tpu.memory_space<vmem>>, vector<1x256xf32>
    %27 = vector.broadcast %26 : vector<1x256xf32> to vector<8x256xf32>
    %28 = arith.addf %25, %27 : vector<8x256xf32>
    %cst_23 = arith.constant 0.000000e+00 : f32
    %29 = vector.broadcast %cst_23 : f32 to vector<8x256xf32>
    %30 = arith.cmpf ogt, %28, %29 : vector<8x256xf32>
    %cst_24 = arith.constant 0.00999999977 : f32
    %31 = vector.broadcast %cst_24 : f32 to vector<8x256xf32>
    %32 = arith.mulf %31, %28 : vector<8x256xf32>
    %33 = arith.select %30, %28, %32 : vector<8x256xi1>, vector<8x256xf32>
    %34 = arith.truncf %33 : vector<8x256xf32> to vector<8x256xbf16>
    %c0_25 = arith.constant 0 : index
    %c0_26 = arith.constant 0 : index
    %35 = vector.load %arg10[%c0_25, %c0_26] : memref<32x32xbf16, #tpu.memory_space<vmem>>, vector<32x32xbf16>
    %cst_27 = arith.constant dense<0.000000e+00> : vector<8x32xf32>
    %36 = tpu.matmul %1, %35, %cst_27 {dimension_numbers = #tpu.dot_dimension_numbers<[1], [0], [0], [1], [0, 0, 1, 1], [], []>} : vector<8x32xbf16>, vector<32x32xbf16>, vector<8x32xf32> -> vector<8x32xf32>
    %c0_28 = arith.constant 0 : index
    %c0_29 = arith.constant 0 : index
    %37 = vector.load %arg11[%c0_28, %c0_29] : memref<32x32xbf16, #tpu.memory_space<vmem>>, vector<32x32xbf16>
    %cst_30 = arith.constant dense<0.000000e+00> : vector<8x32xf32>
    %38 = tpu.matmul %3, %37, %cst_30 {dimension_numbers = #tpu.dot_dimension_numbers<[1], [0], [0], [1], [0, 0, 1, 1], [], []>} : vector<8x32xbf16>, vector<32x32xbf16>, vector<8x32xf32> -> vector<8x32xf32>
    %39 = arith.addf %36, %38 : vector<8x32xf32>
    %c0_31 = arith.constant 0 : index
    %c0_32 = arith.constant 0 : index
    %40 = vector.load %arg12[%c0_31, %c0_32] : memref<128x32xbf16, #tpu.memory_space<vmem>>, vector<128x32xbf16>
    %cst_33 = arith.constant dense<0.000000e+00> : vector<8x32xf32>
    %41 = tpu.matmul %17, %40, %cst_33 {dimension_numbers = #tpu.dot_dimension_numbers<[1], [0], [0], [1], [0, 0, 1, 1], [], []>} : vector<8x128xbf16>, vector<128x32xbf16>, vector<8x32xf32> -> vector<8x32xf32>
    %42 = arith.addf %39, %41 : vector<8x32xf32>
    %c0_34 = arith.constant 0 : index
    %c0_35 = arith.constant 0 : index
    %43 = vector.load %arg13[%c0_34, %c0_35] : memref<256x32xbf16, #tpu.memory_space<vmem>>, vector<256x32xbf16>
    %cst_36 = arith.constant dense<0.000000e+00> : vector<8x32xf32>
    %44 = tpu.matmul %34, %43, %cst_36 {dimension_numbers = #tpu.dot_dimension_numbers<[1], [0], [0], [1], [0, 0, 1, 1], [], []>} : vector<8x256xbf16>, vector<256x32xbf16>, vector<8x32xf32> -> vector<8x32xf32>
    %45 = arith.addf %42, %44 : vector<8x32xf32>
    %c0_37 = arith.constant 0 : index
    %c0_38 = arith.constant 0 : index
    %46 = vector.load %arg14[%c0_37, %c0_38] : memref<1x32xf32, #tpu.memory_space<vmem>>, vector<1x32xf32>
    %47 = vector.broadcast %46 : vector<1x32xf32> to vector<8x32xf32>
    %48 = arith.addf %45, %47 : vector<8x32xf32>
    %cst_39 = arith.constant 0.000000e+00 : f32
    %49 = vector.broadcast %cst_39 : f32 to vector<8x32xf32>
    %50 = arith.cmpf ogt, %48, %49 : vector<8x32xf32>
    %cst_40 = arith.constant 0.00999999977 : f32
    %51 = vector.broadcast %cst_40 : f32 to vector<8x32xf32>
    %52 = arith.mulf %51, %48 : vector<8x32xf32>
    %53 = arith.select %50, %48, %52 : vector<8x32xi1>, vector<8x32xf32>
    %c0_41 = arith.constant 0 : index
    %c0_42 = arith.constant 0 : index
    %54 = vector.load %arg15[%c0_41, %c0_42] : memref<8x32xf32, #tpu.memory_space<vmem>>, vector<8x32xf32>
    tpu.vector_store %arg15[%c0_41, %c0_42], %53 {strides = array<i32>} : memref<8x32xf32, #tpu.memory_space<vmem>>, vector<8x32xf32>,
    return
  }
  func.func @transform_0(%arg0: i32) -> (i32, i32) {
    %c0_i32 = arith.constant 0 : i32
    %c0_i32_0 = arith.constant 0 : i32
    return %arg0, %c0_i32 : i32, i32
  }
  func.func @transform_1(%arg0: i32) -> (i32, i32) {
    %c0_i32 = arith.constant 0 : i32
    %c0_i32_0 = arith.constant 0 : i32
    return %arg0, %c0_i32 : i32, i32
  }
  func.func @transform_2(%arg0: i32) -> (i32, i32) {
    %c0_i32 = arith.constant 0 : i32
    %c0_i32_0 = arith.constant 0 : i32
    %c0_i32_1 = arith.constant 0 : i32
    return %c0_i32, %c0_i32_0 : i32, i32
  }
  func.func @transform_3(%arg0: i32) -> (i32, i32) {
    %c0_i32 = arith.constant 0 : i32
    %c0_i32_0 = arith.constant 0 : i32
    %c0_i32_1 = arith.constant 0 : i32
    return %c0_i32, %c0_i32_0 : i32, i32
  }
  func.func @transform_4(%arg0: i32) -> (i32, i32) {
    %c0_i32 = arith.constant 0 : i32
    %c0_i32_0 = arith.constant 0 : i32
    %c0_i32_1 = arith.constant 0 : i32
    return %c0_i32, %c0_i32_0 : i32, i32
  }
  func.func @transform_5(%arg0: i32) -> (i32, i32) {
    %c0_i32 = arith.constant 0 : i32
    %c0_i32_0 = arith.constant 0 : i32
    %c0_i32_1 = arith.constant 0 : i32
    return %c0_i32, %c0_i32_0 : i32, i32
  }
  func.func @transform_6(%arg0: i32) -> (i32, i32) {
    %c0_i32 = arith.constant 0 : i32
    %c0_i32_0 = arith.constant 0 : i32
    %c0_i32_1 = arith.constant 0 : i32
    return %c0_i32, %c0_i32_0 : i32, i32
  }
  func.func @transform_7(%arg0: i32) -> (i32, i32) {
    %c0_i32 = arith.constant 0 : i32
    %c0_i32_0 = arith.constant 0 : i32
    %c0_i32_1 = arith.constant 0 : i32
    return %c0_i32, %c0_i32_0 : i32, i32
  }
  func.func @transform_8(%arg0: i32) -> (i32, i32) {
    %c0_i32 = arith.constant 0 : i32
    %c0_i32_0 = arith.constant 0 : i32
    %c0_i32_1 = arith.constant 0 : i32
    return %c0_i32, %c0_i32_0 : i32, i32
  }
  func.func @transform_9(%arg0: i32) -> (i32, i32) {
    %c0_i32 = arith.constant 0 : i32
    %c0_i32_0 = arith.constant 0 : i32
    %c0_i32_1 = arith.constant 0 : i32
    return %c0_i32, %c0_i32_0 : i32, i32
  }
  func.func @transform_10(%arg0: i32) -> (i32, i32) {
    %c0_i32 = arith.constant 0 : i32
    %c0_i32_0 = arith.constant 0 : i32
    %c0_i32_1 = arith.constant 0 : i32
    return %c0_i32, %c0_i32_0 : i32, i32
  }
  func.func @transform_11(%arg0: i32) -> (i32, i32) {
    %c0_i32 = arith.constant 0 : i32
    %c0_i32_0 = arith.constant 0 : i32
    %c0_i32_1 = arith.constant 0 : i32
    return %c0_i32, %c0_i32_0 : i32, i32
  }
  func.func @transform_12(%arg0: i32) -> (i32, i32) {
    %c0_i32 = arith.constant 0 : i32
    %c0_i32_0 = arith.constant 0 : i32
    %c0_i32_1 = arith.constant 0 : i32
    return %c0_i32, %c0_i32_0 : i32, i32
  }
  func.func @transform_13(%arg0: i32) -> (i32, i32) {
    %c0_i32 = arith.constant 0 : i32
    %c0_i32_0 = arith.constant 0 : i32
    %c0_i32_1 = arith.constant 0 : i32
    return %c0_i32, %c0_i32_0 : i32, i32
  }
  func.func @transform_14(%arg0: i32) -> (i32, i32) {
    %c0_i32 = arith.constant 0 : i32
    %c0_i32_0 = arith.constant 0 : i32
    return %arg0, %c0_i32 : i32, i32
  }
}

</mosaic_0001>

<llo_original>
// kernel: _dense_ffn_impl.1
$region0: #{_dense_ffn_impl.1}
  #allocation0 [shape = 'u32[]', space=smem, size = 0x4, offset = 0x4, fixed_abs, tag = 'smem constant byte address 0x4 - core index']
  #allocation1 [shape = 'u32[144,128]{1,0:T(1,128)}', space=vmem, size = 0x12000, scoped, tag = 'internal scratch']
  %s0 = inlined_call_operand.vmem [shape: f32[16,32], index: 0, kind: input, shape index: {}]
  %s1 = inlined_call_operand.hbm [shape: f32[16,32], index: 1, kind: input, shape index: {}]
  %s2 = inlined_call_operand.hbm [shape: bf16[32,128], index: 2, kind: input, shape index: {}]
  %s3 = inlined_call_operand.hbm [shape: bf16[32,128], index: 3, kind: input, shape index: {}]
  %s4 = inlined_call_operand.hbm [shape: f32[1,128], index: 4, kind: input, shape index: {}]
  %s5 = inlined_call_operand.vmem [shape: bf16[32,256], index: 5, kind: input, shape index: {}]
  %s6 = inlined_call_operand.vmem [shape: bf16[32,256], index: 6, kind: input, shape index: {}]
  %s7 = inlined_call_operand.vmem [shape: bf16[128,256], index: 7, kind: input, shape index: {}]
  %s8 = inlined_call_operand.vmem [shape: f32[1,256], index: 8, kind: input, shape index: {}]
  %s9 = inlined_call_operand.vmem [shape: bf16[32,32], index: 9, kind: input, shape index: {}]
  %s10 = inlined_call_operand.hbm [shape: bf16[32,32], index: 10, kind: input, shape index: {}]
  %s11 = inlined_call_operand.vmem [shape: bf16[128,32], index: 11, kind: input, shape index: {}]
  %s12 = inlined_call_operand.vmem [shape: bf16[256,32], index: 12, kind: input, shape index: {}]
  %s13 = inlined_call_operand.vmem [shape: f32[1,32], index: 13, kind: input, shape index: {}]
  %s14 = inlined_call_operand.hbm [shape: f32[16,32], index: 14, kind: output, shape index: {}]
  %s15 = sld [smem:[#allocation0]]
  $region109: #{_dense_ffn_impl.1} parent=0
    _
  %s17 = ssub.s32 1, %s15
  %s18 = scalar_select 0, %s17, %s15
  $region1: #{_dense_ffn_impl.1} parent=0
    #allocation2 [shape = 'u8[8192]{0}', space=vmem, size = 0x2000, scoped, tag = 'input window, operand 1']
    #allocation3 [shape = 's32[2]{0}', space=sflag, size = 0x8, scoped, tag = 'scoped memory for _dense_ffn_impl.1']
    #allocation4 [shape = 's32[2]{0}', space=sflag, size = 0x8, scoped, tag = 'scoped memory for _dense_ffn_impl.1']
    #allocation5 [shape = 'u8[8192]{0}', space=vmem, size = 0x2000, scoped, tag = 'input window, operand 2, single buffered']
    #allocation6 [shape = 's32[1]{0}', space=sflag, size = 0x4, scoped, tag = 'scoped memory for _dense_ffn_impl.1']
    #allocation7 [shape = 'u8[8192]{0}', space=vmem, size = 0x2000, scoped, tag = 'input window, operand 3, single buffered']
    #allocation8 [shape = 'u8[512]{0}', space=vmem, size = 0x400, scoped, tag = 'input window, operand 4, single buffered']
    #allocation9 [shape = 's32[1]{0}', space=sflag, size = 0x4, scoped, tag = 'scoped memory for _dense_ffn_impl.1']
    #allocation10 [shape = 'u8[8192]{0}', space=vmem, size = 0x2000, scoped, tag = 'input window, operand 10, single buffered']
    #allocation11 [shape = 'u8[8192]{0}', space=vmem, size = 0x2000, scoped, tag = 'output window, operand 0']
    %19 = vsyncpa [#allocation3], 0
    %s20 = scalar_lea.sflag [#allocation3], 1
    %21 = vsyncpa %s20, 0
    %22 = vsyncpa [#allocation6], 0
    %23 = vsyncpa [#allocation9], 0
    %24 = vsyncpa [#allocation4], 0
    %s25 = scalar_lea.sflag [#allocation4], 1
    %26 = vsyncpa %s25, 0
    loop: start=0, step=1, limit=4
    $region2: #{_dense_ffn_impl.1} parent=1 // loop_pre_header
      _
    $region3: #{_dense_ffn_impl.1} parent=1 // loop_header
      %s28 = sphi 0, %s32
      %p29 = scmp.ge.s32.totalorder %s28, 4
      %s38 = sphi 0, %s40
      %s41 = sphi 0, %s38
      %s42 = sphi 0, %s41
      %s58 = sphi 0, %s42
      %s64 = sphi 0, %s66
      %s67 = sphi 0, %s64
      %s68 = sphi 0, %s67
      %s84 = sphi 0, %s68
      %s88 = sphi 0, %s88
      %s90 = sphi 0, %s88
      %s91 = sphi 0, %s90
      %s105 = sphi 0, %s91
      %s109 = sphi 0, %s109
      %s111 = sphi 0, %s109
      %s112 = sphi 0, %s111
      %s126 = sphi 0, %s112
      %s130 = sphi 0, %s130
      %s132 = sphi 0, %s130
      %s133 = sphi 0, %s132
      %s147 = sphi 0, %s133
      %s151 = sphi 0, %s151
      %s153 = sphi 0, %s151
      %s154 = sphi 0, %s153
      %s168 = sphi 0, %s154
      %s172 = sphi 0, %s172
      %s174 = sphi 0, %s172
      %s175 = sphi 0, %s174
      %s189 = sphi 0, %s175
      %s193 = sphi 0, %s193
      %s195 = sphi 0, %s193
      %s196 = sphi 0, %s195
      %s210 = sphi 0, %s196
      %s214 = sphi 0, %s214
      %s216 = sphi 0, %s214
      %s217 = sphi 0, %s216
      %s231 = sphi 0, %s217
      %s235 = sphi 0, %s235
      %s237 = sphi 0, %s235
      %s238 = sphi 0, %s237
      %s252 = sphi 0, %s238
      %s256 = sphi 0, %s256
      %s258 = sphi 0, %s256
      %s259 = sphi 0, %s258
      %s273 = sphi 0, %s259
      %s277 = sphi 0, %s277
      %s279 = sphi 0, %s277
      %s280 = sphi 0, %s279
      %s294 = sphi 0, %s280
      %s298 = sphi 0, %s298
      %s300 = sphi 0, %s298
      %s301 = sphi 0, %s300
      %s315 = sphi 0, %s301
      %s319 = sphi 0, %s319
      %s321 = sphi 0, %s319
      %s322 = sphi 0, %s321
      %s336 = sphi 0, %s322
      %s342 = sphi 0, %s344
      %s345 = sphi 0, %s342
      %s346 = sphi 0, %s345
      %s362 = sphi 0, %s346
    $region4: #{_dense_ffn_impl.1} parent=1 // loop_header_branch
      %31 = sbr.rel (%p29) target = $region8
    $region5: #{_dense_ffn_impl.1} parent=1 // loop_body
      %s33 = ssub.s32 %s28, 1
      %s34 = ssub.s32 %s28, 2
      %s35 = sadd.s32 %s28, 1
      %s36 = ssub.s32 %s28, %s35
      %p37 = scmp.eq.s32.totalorder %s36, 0
      %s39 = sadd.s32 %s38, 1
      %s40 = scalar_select %p37, %s38, %s39
      %p43 = pneg %p37
      %p44 = scmp.eq.s32.totalorder %s28, 1
      %p45 = por %p43, %p44
      %p46 = scmp.ne.s32.totalorder %s38, %s41
      %p47 = scmp.eq.s32.totalorder %s28, 0
      %p48 = por %p46, %p47
      %p49 = scmp.ne.s32.totalorder %s38, %s41
      %p50 = scmp.eq.s32.totalorder %s33, 1
      %p51 = por %p49, %p50
      %p52 = scmp.ne.s32.totalorder %s41, %s42
      %p53 = scmp.eq.s32.totalorder %s33, 0
      %p54 = por %p52, %p53
      %p55 = scmp.ne.s32.totalorder %s41, %s42
      %p56 = scmp.eq.s32.totalorder %s34, 1
      %p57 = por %p55, %p56
      %p59 = scmp.ne.s32.totalorder %s42, %s58
      %p60 = scmp.eq.s32.totalorder %s34, 0
      %p61 = por %p59, %p60
      %s62 = ssub.s32 %s28, %s35
      %p63 = scmp.eq.s32.totalorder %s62, 0
      %s65 = sadd.s32 %s64, 1
      %s66 = scalar_select %p63, %s64, %s65
      %p69 = pneg %p63
      %p70 = scmp.eq.s32.totalorder %s28, 1
      %p71 = por %p69, %p70
      %p72 = scmp.ne.s32.totalorder %s64, %s67
      %p73 = scmp.eq.s32.totalorder %s28, 0
      %p74 = por %p72, %p73
      %p75 = scmp.ne.s32.totalorder %s64, %s67
      %p76 = scmp.eq.s32.totalorder %s33, 1
      %p77 = por %p75, %p76
      %p78 = scmp.ne.s32.totalorder %s67, %s68
      %p79 = scmp.eq.s32.totalorder %s33, 0
      %p80 = por %p78, %p79
      %p81 = scmp.ne.s32.totalorder %s67, %s68
      %p82 = scmp.eq.s32.totalorder %s34, 1
      %p83 = por %p81, %p82
      %p85 = scmp.ne.s32.totalorder %s68, %s84
      %p86 = scmp.eq.s32.totalorder %s34, 0
      %p87 = por %p85, %p86
      %s89 = sadd.s32 %s88, 1
      %p92 = scmp.eq.s32.totalorder %s28, 1
      %p93 = scmp.ne.s32.totalorder %s88, %s90
      %p94 = scmp.eq.s32.totalorder %s28, 0
      %p95 = por %p93, %p94
      %p96 = scmp.ne.s32.totalorder %s88, %s90
      %p97 = scmp.eq.s32.totalorder %s33, 1
      %p98 = por %p96, %p97
      %p99 = scmp.ne.s32.totalorder %s90, %s91
      %p100 = scmp.eq.s32.totalorder %s33, 0
      %p101 = por %p99, %p100
      %p102 = scmp.ne.s32.totalorder %s90, %s91
      %p103 = scmp.eq.s32.totalorder %s34, 1
      %p104 = por %p102, %p103
      %p106 = scmp.ne.s32.totalorder %s91, %s105
      %p107 = scmp.eq.s32.totalorder %s34, 0
      %p108 = por %p106, %p107
      %s110 = sadd.s32 %s109, 1
      %p113 = scmp.eq.s32.totalorder %s28, 1
      %p114 = scmp.ne.s32.totalorder %s109, %s111
      %p115 = scmp.eq.s32.totalorder %s28, 0
      %p116 = por %p114, %p115
      %p117 = scmp.ne.s32.totalorder %s109, %s111
      %p118 = scmp.eq.s32.totalorder %s33, 1
      %p119 = por %p117, %p118
      %p120 = scmp.ne.s32.totalorder %s111, %s112
      %p121 = scmp.eq.s32.totalorder %s33, 0
      %p122 = por %p120, %p121
      %p123 = scmp.ne.s32.totalorder %s111, %s112
      %p124 = scmp.eq.s32.totalorder %s34, 1
      %p125 = por %p123, %p124
      %p127 = scmp.ne.s32.totalorder %s112, %s126
      %p128 = scmp.eq.s32.totalorder %s34, 0
      %p129 = por %p127, %p128
      %s131 = sadd.s32 %s130, 1
      %p134 = scmp.eq.s32.totalorder %s28, 1
      %p135 = scmp.ne.s32.totalorder %s130, %s132
      %p136 = scmp.eq.s32.totalorder %s28, 0
      %p137 = por %p135, %p136
      %p138 = scmp.ne.s32.totalorder %s130, %s132
      %p139 = scmp.eq.s32.totalorder %s33, 1
      %p140 = por %p138, %p139
      %p141 = scmp.ne.s32.totalorder %s132, %s133
      %p142 = scmp.eq.s32.totalorder %s33, 0
      %p143 = por %p141, %p142
      %p144 = scmp.ne.s32.totalorder %s132, %s133
      %p145 = scmp.eq.s32.totalorder %s34, 1
      %p146 = por %p144, %p145
      %p148 = scmp.ne.s32.totalorder %s133, %s147
      %p149 = scmp.eq.s32.totalorder %s34, 0
      %p150 = por %p148, %p149
      %s152 = sadd.s32 %s151, 1
      %p155 = scmp.eq.s32.totalorder %s28, 1
      %p156 = scmp.ne.s32.totalorder %s151, %s153
      %p157 = scmp.eq.s32.totalorder %s28, 0
      %p158 = por %p156, %p157
      %p159 = scmp.ne.s32.totalorder %s151, %s153
      %p160 = scmp.eq.s32.totalorder %s33, 1
      %p161 = por %p159, %p160
      %p162 = scmp.ne.s32.totalorder %s153, %s154
      %p163 = scmp.eq.s32.totalorder %s33, 0
      %p164 = por %p162, %p163
      %p165 = scmp.ne.s32.totalorder %s153, %s154
      %p166 = scmp.eq.s32.totalorder %s34, 1
      %p167 = por %p165, %p166
      %p169 = scmp.ne.s32.totalorder %s154, %s168
      %p170 = scmp.eq.s32.totalorder %s34, 0
      %p171 = por %p169, %p170
      %s173 = sadd.s32 %s172, 1
      %p176 = scmp.eq.s32.totalorder %s28, 1
      %p177 = scmp.ne.s32.totalorder %s172, %s174
      %p178 = scmp.eq.s32.totalorder %s28, 0
      %p179 = por %p177, %p178
      %p180 = scmp.ne.s32.totalorder %s172, %s174
      %p181 = scmp.eq.s32.totalorder %s33, 1
      %p182 = por %p180, %p181
      %p183 = scmp.ne.s32.totalorder %s174, %s175
      %p184 = scmp.eq.s32.totalorder %s33, 0
      %p185 = por %p183, %p184
      %p186 = scmp.ne.s32.totalorder %s174, %s175
      %p187 = scmp.eq.s32.totalorder %s34, 1
      %p188 = por %p186, %p187
      %p190 = scmp.ne.s32.totalorder %s175, %s189
      %p191 = scmp.eq.s32.totalorder %s34, 0
      %p192 = por %p190, %p191
      %s194 = sadd.s32 %s193, 1
      %p197 = scmp.eq.s32.totalorder %s28, 1
      %p198 = scmp.ne.s32.totalorder %s193, %s195
      %p199 = scmp.eq.s32.totalorder %s28, 0
      %p200 = por %p198, %p199
      %p201 = scmp.ne.s32.totalorder %s193, %s195
      %p202 = scmp.eq.s32.totalorder %s33, 1
      %p203 = por %p201, %p202
      %p204 = scmp.ne.s32.totalorder %s195, %s196
      %p205 = scmp.eq.s32.totalorder %s33, 0
      %p206 = por %p204, %p205
      %p207 = scmp.ne.s32.totalorder %s195, %s196
      %p208 = scmp.eq.s32.totalorder %s34, 1
      %p209 = por %p207, %p208
      %p211 = scmp.ne.s32.totalorder %s196, %s210
      %p212 = scmp.eq.s32.totalorder %s34, 0
      %p213 = por %p211, %p212
      %s215 = sadd.s32 %s214, 1
      %p218 = scmp.eq.s32.totalorder %s28, 1
      %p219 = scmp.ne.s32.totalorder %s214, %s216
      %p220 = scmp.eq.s32.totalorder %s28, 0
      %p221 = por %p219, %p220
      %p222 = scmp.ne.s32.totalorder %s214, %s216
      %p223 = scmp.eq.s32.totalorder %s33, 1
      %p224 = por %p222, %p223
      %p225 = scmp.ne.s32.totalorder %s216, %s217
      %p226 = scmp.eq.s32.totalorder %s33, 0
      %p227 = por %p225, %p226
      %p228 = scmp.ne.s32.totalorder %s216, %s217
      %p229 = scmp.eq.s32.totalorder %s34, 1
      %p230 = por %p228, %p229
      %p232 = scmp.ne.s32.totalorder %s217, %s231
      %p233 = scmp.eq.s32.totalorder %s34, 0
      %p234 = por %p232, %p233
      %s236 = sadd.s32 %s235, 1
      %p239 = scmp.eq.s32.totalorder %s28, 1
      %p240 = scmp.ne.s32.totalorder %s235, %s237
      %p241 = scmp.eq.s32.totalorder %s28, 0
      %p242 = por %p240, %p241
      %p243 = scmp.ne.s32.totalorder %s235, %s237
      %p244 = scmp.eq.s32.totalorder %s33, 1
      %p245 = por %p243, %p244
      %p246 = scmp.ne.s32.totalorder %s237, %s238
      %p247 = scmp.eq.s32.totalorder %s33, 0
      %p248 = por %p246, %p247
      %p249 = scmp.ne.s32.totalorder %s237, %s238
      %p250 = scmp.eq.s32.totalorder %s34, 1
      %p251 = por %p249, %p250
      %p253 = scmp.ne.s32.totalorder %s238, %s252
      %p254 = scmp.eq.s32.totalorder %s34, 0
      %p255 = por %p253, %p254
      %s257 = sadd.s32 %s256, 1
      %p260 = scmp.eq.s32.totalorder %s28, 1
      %p261 = scmp.ne.s32.totalorder %s256, %s258
      %p262 = scmp.eq.s32.totalorder %s28, 0
      %p263 = por %p261, %p262
      %p264 = scmp.ne.s32.totalorder %s256, %s258
      %p265 = scmp.eq.s32.totalorder %s33, 1
      %p266 = por %p264, %p265
      %p267 = scmp.ne.s32.totalorder %s258, %s259
      %p268 = scmp.eq.s32.totalorder %s33, 0
      %p269 = por %p267, %p268
      %p270 = scmp.ne.s32.totalorder %s258, %s259
      %p271 = scmp.eq.s32.totalorder %s34, 1
      %p272 = por %p270, %p271
      %p274 = scmp.ne.s32.totalorder %s259, %s273
      %p275 = scmp.eq.s32.totalorder %s34, 0
      %p276 = por %p274, %p275
      %s278 = sadd.s32 %s277, 1
      %p281 = scmp.eq.s32.totalorder %s28, 1
      %p282 = scmp.ne.s32.totalorder %s277, %s279
      %p283 = scmp.eq.s32.totalorder %s28, 0
      %p284 = por %p282, %p283
      %p285 = scmp.ne.s32.totalorder %s277, %s279
      %p286 = scmp.eq.s32.totalorder %s33, 1
      %p287 = por %p285, %p286
      %p288 = scmp.ne.s32.totalorder %s279, %s280
      %p289 = scmp.eq.s32.totalorder %s33, 0
      %p290 = por %p288, %p289
      %p291 = scmp.ne.s32.totalorder %s279, %s280
      %p292 = scmp.eq.s32.totalorder %s34, 1
      %p293 = por %p291, %p292
      %p295 = scmp.ne.s32.totalorder %s280, %s294
      %p296 = scmp.eq.s32.totalorder %s34, 0
      %p297 = por %p295, %p296
      %s299 = sadd.s32 %s298, 1
      %p302 = scmp.eq.s32.totalorder %s28, 1
      %p303 = scmp.ne.s32.totalorder %s298, %s300
      %p304 = scmp.eq.s32.totalorder %s28, 0
      %p305 = por %p303, %p304
      %p306 = scmp.ne.s32.totalorder %s298, %s300
      %p307 = scmp.eq.s32.totalorder %s33, 1
      %p308 = por %p306, %p307
      %p309 = scmp.ne.s32.totalorder %s300, %s301
      %p310 = scmp.eq.s32.totalorder %s33, 0
      %p311 = por %p309, %p310
      %p312 = scmp.ne.s32.totalorder %s300, %s301
      %p313 = scmp.eq.s32.totalorder %s34, 1
      %p314 = por %p312, %p313
      %p316 = scmp.ne.s32.totalorder %s301, %s315
      %p317 = scmp.eq.s32.totalorder %s34, 0
      %p318 = por %p316, %p317
      %s320 = sadd.s32 %s319, 1
      %p323 = scmp.eq.s32.totalorder %s28, 1
      %p324 = scmp.ne.s32.totalorder %s319, %s321
      %p325 = scmp.eq.s32.totalorder %s28, 0
      %p326 = por %p324, %p325
      %p327 = scmp.ne.s32.totalorder %s319, %s321
      %p328 = scmp.eq.s32.totalorder %s33, 1
      %p329 = por %p327, %p328
      %p330 = scmp.ne.s32.totalorder %s321, %s322
      %p331 = scmp.eq.s32.totalorder %s33, 0
      %p332 = por %p330, %p331
      %p333 = scmp.ne.s32.totalorder %s321, %s322
      %p334 = scmp.eq.s32.totalorder %s34, 1
      %p335 = por %p333, %p334
      %p337 = scmp.ne.s32.totalorder %s322, %s336
      %p338 = scmp.eq.s32.totalorder %s34, 0
      %p339 = por %p337, %p338
      %s340 = ssub.s32 %s28, %s35
      %p341 = scmp.eq.s32.totalorder %s340, 0
      %s343 = sadd.s32 %s342, 1
      %s344 = scalar_select %p341, %s342, %s343
      %p347 = pneg %p341
      %p348 = scmp.eq.s32.totalorder %s28, 1
      %p349 = por %p347, %p348
      %p350 = scmp.ne.s32.totalorder %s342, %s345
      %p351 = scmp.eq.s32.totalorder %s28, 0
      %p352 = por %p350, %p351
      %p353 = scmp.ne.s32.totalorder %s342, %s345
      %p354 = scmp.eq.s32.totalorder %s33, 1
      %p355 = por %p353, %p354
      %p356 = scmp.ne.s32.totalorder %s345, %s346
      %p357 = scmp.eq.s32.totalorder %s33, 0
      %p358 = por %p356, %p357
      %p359 = scmp.ne.s32.totalorder %s345, %s346
      %p360 = scmp.eq.s32.totalorder %s34, 1
      %p361 = por %p359, %p360
      %p363 = scmp.ne.s32.totalorder %s346, %s362
      %p364 = scmp.eq.s32.totalorder %s34, 0
      %p365 = por %p363, %p364
      %p366 = scmp.le.s32.totalorder 1, %s28
      %p367 = scmp.lt.s32.totalorder %s28, 3
      %p368 = pnand %p366, %p367
      %p369 = pneg %p368
      // Predicated region
      $region9: #{_dense_ffn_impl.1} parent=5 // pred_check
        _
      $region10: #{_dense_ffn_impl.1} parent=5 // pred_check_branch
        %371 = sbr.rel (%p368) target = $region12
      $region11: #{_dense_ffn_impl.1} parent=5 // pred_region
        %s372 = ssub.s32 %s28, 1
        // Predicated region
        $region13: #{_dense_ffn_impl.1} parent=11 // pred_check
          %p373 = pneg %p101
        $region14: #{_dense_ffn_impl.1} parent=11 // pred_check_branch
          %375 = sbr.rel (%p373) target = $region16
        $region15: #{_dense_ffn_impl.1} parent=11 // pred_region
          %s377 = ssub.s32 256, 256
          %378 = vsyncadd [#allocation6], %s377
          %s379 = sshll.u32 [#allocation5], 4
          %s380 = int_to_ptr.vmem [resolvable:$true] %s379
          %385 = dma.hbm_to_vmem [thread:$0]  %s2, 256, %s380, [#allocation6], 64, 64, 4
        $region16: #{_dense_ffn_impl.1} parent=11 // pred_fallthru
          _
        // Predicated region
        $region17: #{_dense_ffn_impl.1} parent=11 // pred_check
          %p386 = pneg %p122
        $region18: #{_dense_ffn_impl.1} parent=11 // pred_check_branch
          %388 = sbr.rel (%p386) target = $region20
        $region19: #{_dense_ffn_impl.1} parent=11 // pred_region
          %s390 = ssub.s32 256, 256
          %391 = vsyncadd [#allocation6], %s390
          %s392 = sshll.u32 [#allocation7], 4
          %s393 = int_to_ptr.vmem [resolvable:$true] %s392
          %398 = dma.hbm_to_vmem [thread:$0]  %s3, 256, %s393, [#allocation6], 64, 64, 4
        $region20: #{_dense_ffn_impl.1} parent=11 // pred_fallthru
          _
        // Predicated region
        $region21: #{_dense_ffn_impl.1} parent=11 // pred_check
          %p399 = pneg %p143
        $region22: #{_dense_ffn_impl.1} parent=11 // pred_check_branch
          %401 = sbr.rel (%p399) target = $region24
        $region23: #{_dense_ffn_impl.1} parent=11 // pred_region
          %s403 = ssub.s32 16, 16
          %404 = vsyncadd [#allocation9], %s403
          %s406 = sshll.u32 [#allocation8], 4
          %s407 = int_to_ptr.vmem [resolvable:$true] %s406
          %409 = dma.hbm_to_vmem [thread:$0]  %s4, 16, %s407, [#allocation9]
        $region24: #{_dense_ffn_impl.1} parent=11 // pred_fallthru
          _
        // Predicated region
        $region25: #{_dense_ffn_impl.1} parent=11 // pred_check
          %p410 = pneg %p164
        $region26: #{_dense_ffn_impl.1} parent=11 // pred_check_branch
          %412 = sbr.rel (%p410) target = $region28
        $region27: #{_dense_ffn_impl.1} parent=11 // pred_region
          _
        $region28: #{_dense_ffn_impl.1} parent=11 // pred_fallthru
          _
        // Predicated region
        $region29: #{_dense_ffn_impl.1} parent=11 // pred_check
          %p413 = pneg %p185
        $region30: #{_dense_ffn_impl.1} parent=11 // pred_check_branch
          %415 = sbr.rel (%p413) target = $region32
        $region31: #{_dense_ffn_impl.1} parent=11 // pred_region
          _
        $region32: #{_dense_ffn_impl.1} parent=11 // pred_fallthru
          _
        // Predicated region
        $region33: #{_dense_ffn_impl.1} parent=11 // pred_check
          %p416 = pneg %p206
        $region34: #{_dense_ffn_impl.1} parent=11 // pred_check_branch
          %418 = sbr.rel (%p416) target = $region36
        $region35: #{_dense_ffn_impl.1} parent=11 // pred_region
          _
        $region36: #{_dense_ffn_impl.1} parent=11 // pred_fallthru
          _
        // Predicated region
        $region37: #{_dense_ffn_impl.1} parent=11 // pred_check
          %p419 = pneg %p227
        $region38: #{_dense_ffn_impl.1} parent=11 // pred_check_branch
          %421 = sbr.rel (%p419) target = $region40
        $region39: #{_dense_ffn_impl.1} parent=11 // pred_region
          _
        $region40: #{_dense_ffn_impl.1} parent=11 // pred_fallthru
          _
        // Predicated region
        $region41: #{_dense_ffn_impl.1} parent=11 // pred_check
          %p422 = pneg %p248
        $region42: #{_dense_ffn_impl.1} parent=11 // pred_check_branch
          %424 = sbr.rel (%p422) target = $region44
        $region43: #{_dense_ffn_impl.1} parent=11 // pred_region
          _
        $region44: #{_dense_ffn_impl.1} parent=11 // pred_fallthru
          _
        // Predicated region
        $region45: #{_dense_ffn_impl.1} parent=11 // pred_check
          %p425 = pneg %p269
        $region46: #{_dense_ffn_impl.1} parent=11 // pred_check_branch
          %427 = sbr.rel (%p425) target = $region48
        $region47: #{_dense_ffn_impl.1} parent=11 // pred_region
          %s429 = ssub.s32 256, 256
          %430 = vsyncadd [#allocation9], %s429
          %s431 = sshll.u32 [#allocation10], 4
          %s432 = int_to_ptr.vmem [resolvable:$true] %s431
          %437 = dma.hbm_to_vmem [thread:$0]  %s10, 256, %s432, [#allocation9], 64, 64, 4
        $region48: #{_dense_ffn_impl.1} parent=11 // pred_fallthru
          _
        // Predicated region
        $region49: #{_dense_ffn_impl.1} parent=11 // pred_check
          %p438 = pneg %p290
        $region50: #{_dense_ffn_impl.1} parent=11 // pred_check_branch
          %440 = sbr.rel (%p438) target = $region52
        $region51: #{_dense_ffn_impl.1} parent=11 // pred_region
          _
        $region52: #{_dense_ffn_impl.1} parent=11 // pred_fallthru
          _
        // Predicated region
        $region53: #{_dense_ffn_impl.1} parent=11 // pred_check
          %p441 = pneg %p311
        $region54: #{_dense_ffn_impl.1} parent=11 // pred_check_branch
          %443 = sbr.rel (%p441) target = $region56
        $region55: #{_dense_ffn_impl.1} parent=11 // pred_region
          _
        $region56: #{_dense_ffn_impl.1} parent=11 // pred_fallthru
          _
        // Predicated region
        $region57: #{_dense_ffn_impl.1} parent=11 // pred_check
          %p444 = pneg %p332
        $region58: #{_dense_ffn_impl.1} parent=11 // pred_check_branch
          %446 = sbr.rel (%p444) target = $region60
        $region59: #{_dense_ffn_impl.1} parent=11 // pred_region
          _
        $region60: #{_dense_ffn_impl.1} parent=11 // pred_fallthru
          _
      $region12: #{_dense_ffn_impl.1} parent=5 // pred_fallthru
        _
      %p447 = scmp.lt.s32.totalorder %s28, 2
      // Predicated region
      $region61: #{_dense_ffn_impl.1} parent=5 // pred_check
        %p448 = pneg %p447
      $region62: #{_dense_ffn_impl.1} parent=5 // pred_check_branch
        %450 = sbr.rel (%p448) target = $region64
      $region63: #{_dense_ffn_impl.1} parent=5 // pred_region
        // Predicated region
        $region65: #{_dense_ffn_impl.1} parent=63 // pred_check
          %p451 = pneg %p48
        $region66: #{_dense_ffn_impl.1} parent=63 // pred_check_branch
          %453 = sbr.rel (%p451) target = $region68
        $region67: #{_dense_ffn_impl.1} parent=63 // pred_region
          %p454 = scmp.lt.s32.totalorder %s28, 1
          %s455 = scalar_select %p454, %s28, 1
          %s456 = smul.addr %s455, 8
          %s457 = scalar_lea.vmem %s0, %s456
        $region68: #{_dense_ffn_impl.1} parent=63 // pred_fallthru
          _
        // Predicated region
        $region69: #{_dense_ffn_impl.1} parent=63 // pred_check
          %p458 = pneg %p74
        $region70: #{_dense_ffn_impl.1} parent=63 // pred_check_branch
          %460 = sbr.rel (%p458) target = $region72
        $region71: #{_dense_ffn_impl.1} parent=63 // pred_region
          %s461 = sand.u32 %s64, 1
          %s462 = scalar_lea.sflag [#allocation3], %s461
          %s463 = sand.u32 %s64, 1
          %s464 = smul.addr %s463, 8
          %s465 = scalar_lea.vmem [#allocation2], %s464
          %s467 = ssub.s32 128, 128
          %468 = vsyncadd %s462, %s467
          %s469 = smul.addr %s28, 128
          %s470 = scalar_lea.hbm %s1, %s469
          %s472 = sshll.u32 %s465, 4
          %s473 = int_to_ptr.vmem [resolvable:$true] %s472
          %475 = dma.hbm_to_vmem [thread:$0]  %s470, 128, %s473, %s462
        $region72: #{_dense_ffn_impl.1} parent=63 // pred_fallthru
          _
      $region64: #{_dense_ffn_impl.1} parent=5 // pred_fallthru
        _
      %p476 = scmp.le.s32.totalorder 1, %s28
      %p477 = scmp.lt.s32.totalorder %s28, 3
      %p478 = pnand %p476, %p477
      %p479 = pneg %p478
      // Predicated region
      $region73: #{_dense_ffn_impl.1} parent=5 // pred_check
        _
      $region74: #{_dense_ffn_impl.1} parent=5 // pred_check_branch
        %481 = sbr.rel (%p478) target = $region76
      $region75: #{_dense_ffn_impl.1} parent=5 // pred_region
        %s482 = ssub.s32 %s28, 1
        %s483 = sand.u32 %s67, 1
        %s484 = scalar_lea.sflag [#allocation3], %s483
        %s485 = sand.u32 %s67, 1
        %s486 = smul.addr %s485, 8
        %s487 = scalar_lea.vmem [#allocation2], %s486
        // Predicated region
        $region77: #{_dense_ffn_impl.1} parent=75 // pred_check
          %p488 = pneg %p80
        $region78: #{_dense_ffn_impl.1} parent=75 // pred_check_branch
          %490 = sbr.rel (%p488) target = $region80
        $region79: #{_dense_ffn_impl.1} parent=75 // pred_region
          %491 = dma.done %s484, 128
        $region80: #{_dense_ffn_impl.1} parent=75 // pred_fallthru
          _
        // Predicated region
        $region81: #{_dense_ffn_impl.1} parent=75 // pred_check
          %p492 = pneg %p101
        $region82: #{_dense_ffn_impl.1} parent=75 // pred_check_branch
          %494 = sbr.rel (%p492) target = $region84
        $region83: #{_dense_ffn_impl.1} parent=75 // pred_region
          %495 = dma.done [#allocation6], 256
        $region84: #{_dense_ffn_impl.1} parent=75 // pred_fallthru
          _
        // Predicated region
        $region85: #{_dense_ffn_impl.1} parent=75 // pred_check
          %p496 = pneg %p122
        $region86: #{_dense_ffn_impl.1} parent=75 // pred_check_branch
          %498 = sbr.rel (%p496) target = $region88
        $region87: #{_dense_ffn_impl.1} parent=75 // pred_region
          %499 = dma.done [#allocation6], 256
        $region88: #{_dense_ffn_impl.1} parent=75 // pred_fallthru
          _
        // Predicated region
        $region89: #{_dense_ffn_impl.1} parent=75 // pred_check
          %p500 = pneg %p143
        $region90: #{_dense_ffn_impl.1} parent=75 // pred_check_branch
          %502 = sbr.rel (%p500) target = $region92
        $region91: #{_dense_ffn_impl.1} parent=75 // pred_region
          %503 = dma.done [#allocation9], 16
        $region92: #{_dense_ffn_impl.1} parent=75 // pred_fallthru
          _
        // Predicated region
        $region93: #{_dense_ffn_impl.1} parent=75 // pred_check
          %p504 = pneg %p269
        $region94: #{_dense_ffn_impl.1} parent=75 // pred_check_branch
          %506 = sbr.rel (%p504) target = $region96
        $region95: #{_dense_ffn_impl.1} parent=75 // pred_region
          %507 = dma.done [#allocation9], 256
        $region96: #{_dense_ffn_impl.1} parent=75 // pred_fallthru
          _
        %p508 = scmp.lt.s32.totalorder %s33, 1
        %s509 = scalar_select %p508, %s33, 1
        %s510 = smul.addr %s509, 8
        %s511 = scalar_lea.vmem %s0, %s510
        %p512 = pneg %p54
        %p513 = pneg %p51
        %s514 = sand.u32 %s67, 1
        %s515 = scalar_lea.sflag [#allocation3], %s514
        %s516 = sand.u32 %s67, 1
        %s517 = smul.addr %s516, 8
        %s518 = scalar_lea.vmem [#allocation2], %s517
        %p519 = pneg %p80
        %p520 = pneg %p77
        %p521 = pneg %p101
        %p522 = pneg %p98
        %p523 = pneg %p122
        %p524 = pneg %p119
        %p525 = pneg %p143
        %p526 = pneg %p140
        %p527 = pneg %p164
        %p528 = pneg %p161
        %p529 = pneg %p185
        %p530 = pneg %p182
        %p531 = pneg %p206
        %p532 = pneg %p203
        %p533 = pneg %p227
        %p534 = pneg %p224
        %p535 = pneg %p248
        %p536 = pneg %p245
        %p537 = pneg %p269
        %p538 = pneg %p266
        %p539 = pneg %p290
        %p540 = pneg %p287
        %p541 = pneg %p311
        %p542 = pneg %p308
        %p543 = pneg %p332
        %p544 = pneg %p329
        %p545 = pneg %p358
        %p546 = pneg %p355
        %s547 = sand.u32 %s345, 1
        %s548 = scalar_lea.sflag [#allocation4], %s547
        %s549 = sand.u32 %s345, 1
        %s550 = smul.addr %s549, 8
        %s551 = scalar_lea.vmem [#allocation11], %s550
        %p552 = scmp.lt.s32.totalorder %s33, 1
        %s553 = scalar_select %p552, %s33, 1
        %s554 = smul.addr %s553, 8
        %s555 = scalar_lea.vmem %s0, %s554
        %v557 = vld [vmem:[%s555] sm:$0xff]
        %v558 = vpack.c.bf16 %v557, %v557
        %v559 = vld [vmem:[%s487] sm:$0xff]
        %v560 = vpack.c.bf16 %v559, %v559
        %v561 = vld [vmem:[#allocation5] sm:$0xf]
        %v562 = vld [vmem:[#allocation5 + $0x4] sm:$0xf]
        %v563 = vld [vmem:[#allocation5 + $0x8] sm:$0xf]
        %v564 = vld [vmem:[#allocation5 + $0xc] sm:$0xf]
        %v565 = vld [vmem:[#allocation7] sm:$0xf]
        %v566 = vld [vmem:[#allocation7 + $0x4] sm:$0xf]
        %v567 = vld [vmem:[#allocation7 + $0x8] sm:$0xf]
        %v568 = vld [vmem:[#allocation7 + $0xc] sm:$0xf]
        %v573 = vunpack.c.l.b16 %v565
        %v574 = vunpack.c.l.b16 %v566
        %v575 = vunpack.c.l.b16 %v567
        %v576 = vunpack.c.l.b16 %v568
        %v577 = vpack.c.b16 %v574, %v573
        %v578 = vpack.c.b16 %v576, %v575
        %vm581 = vcmask 261120
        %v583 = vsel %vm581, %v560, 0
        %585 = vmatprep.subr.bf16.mxu0 0
        %586 = vmatpush1.bf16.msra.mxu0 %v577
        %587 = vmatprep.subr.bf16.mxu0 0
        %588 = vmatpush1.bf16.msra.mxu0 %v578
        %589 = vmatprep.subr.bf16.mxu0 0
        %590 = vmatpush1.bf16.msra.mxu0 0
        %591 = vmatprep.subr.bf16.mxu0 0
        %592 = vmatpush1.bf16.msra.mxu0 0
        %593 = vmatprep.subr.bf16.mxu0 0
        %594 = vmatpush1.bf16.msra.mxu0 0
        %595 = vmatprep.subr.bf16.mxu0 0
        %596 = vmatpush1.bf16.msra.mxu0 0
        %597 = vmatprep.subr.bf16.mxu0 0
        %598 = vmatpush1.bf16.msra.mxu0 0
        %599 = vmatprep.subr.bf16.mxu0 0
        %600 = vmatpush1.bf16.msra.mxu0 0
        %601 = vmatprep.subr.bf16.mxu0 0
        %602 = vmatpush1.bf16.msra.mxu0 0
        %603 = vmatprep.subr.bf16.mxu0 0
        %604 = vmatpush1.bf16.msra.mxu0 0
        %605 = vmatprep.subr.bf16.mxu0 0
        %606 = vmatpush1.bf16.msra.mxu0 0
        %607 = vmatprep.subr.bf16.mxu0 0
        %608 = vmatpush1.bf16.msra.mxu0 0
        %609 = vmatprep.subr.bf16.mxu0 0
        %610 = vmatpush1.bf16.msra.mxu0 0
        %611 = vmatprep.subr.bf16.mxu0 0
        %612 = vmatpush1.bf16.msra.mxu0 0
        %613 = vmatprep.subr.bf16.mxu0 0
        %614 = vmatpush1.bf16.msra.mxu0 0
        %615 = vmatprep.subr.bf16.mxu0 0
        %616 = vmatpush1.bf16.msra.mxu0 0
        %617 = vmatprep.mubr.bf16.mxu0 0
        %618 = vmatmul.mubr.bf16.gmra.mrb[0].mxu0 %v583
        %v619 = vpop.f32.mrb[0].mxu0
        %v620 = vadd.f32 0.0, %v619
        %v621 = vpop.f32.mrb[0].mxu0
        %v622 = vpop.f32.mrb[0].mxu0
        %v623 = vpop.f32.mrb[0].mxu0
        %624 = vdwg.mxu0
        %v629 = vunpack.c.l.b16 %v561
        %v630 = vunpack.c.l.b16 %v562
        %v631 = vunpack.c.l.b16 %v563
        %v632 = vunpack.c.l.b16 %v564
        %v633 = vpack.c.b16 %v630, %v629
        %v634 = vpack.c.b16 %v632, %v631
        %v638 = vsel %vm581, %v558, 0
        %640 = vmatprep.subr.bf16.mxu0 0
        %641 = vmatpush1.bf16.msra.mxu0 %v633
        %642 = vmatprep.subr.bf16.mxu0 0
        %643 = vmatpush1.bf16.msra.mxu0 %v634
        %644 = vmatprep.subr.bf16.mxu0 0
        %645 = vmatpush1.bf16.msra.mxu0 0
        %646 = vmatprep.subr.bf16.mxu0 0
        %647 = vmatpush1.bf16.msra.mxu0 0
        %648 = vmatprep.subr.bf16.mxu0 0
        %649 = vmatpush1.bf16.msra.mxu0 0
        %650 = vmatprep.subr.bf16.mxu0 0
        %651 = vmatpush1.bf16.msra.mxu0 0
        %652 = vmatprep.subr.bf16.mxu0 0
        %653 = vmatpush1.bf16.msra.mxu0 0
        %654 = vmatprep.subr.bf16.mxu0 0
        %655 = vmatpush1.bf16.msra.mxu0 0
        %656 = vmatprep.subr.bf16.mxu0 0
        %657 = vmatpush1.bf16.msra.mxu0 0
        %658 = vmatprep.subr.bf16.mxu0 0
        %659 = vmatpush1.bf16.msra.mxu0 0
        %660 = vmatprep.subr.bf16.mxu0 0
        %661 = vmatpush1.bf16.msra.mxu0 0
        %662 = vmatprep.subr.bf16.mxu0 0
        %663 = vmatpush1.bf16.msra.mxu0 0
        %664 = vmatprep.subr.bf16.mxu0 0
        %665 = vmatpush1.bf16.msra.mxu0 0
        %666 = vmatprep.subr.bf16.mxu0 0
        %667 = vmatpush1.bf16.msra.mxu0 0
        %668 = vmatprep.subr.bf16.mxu0 0
        %669 = vmatpush1.bf16.msra.mxu0 0
        %670 = vmatprep.subr.bf16.mxu0 0
        %671 = vmatpush1.bf16.msra.mxu0 0
        %672 = vmatprep.mubr.bf16.mxu0 0
        %673 = vmatmul.mubr.bf16.gmra.mrb[0].mxu0 %v638
        %v674 = vpop.f32.mrb[0].mxu0
        %v675 = vadd.f32 %v620, %v674
        %v676 = vpop.f32.mrb[0].mxu0
        %v677 = vpop.f32.mrb[0].mxu0
        %v678 = vpop.f32.mrb[0].mxu0
        %679 = vdwg.mxu0
        %v680 = vld [vmem:[#allocation8] sm:$0x1]
        %v682 = vlaneseq
        %v683 = vshrl.u32 %v682, 7
        %v684 = vsub.s32 0, %v683
        %v685 = vrot.slane %v680, %v684
        %v687 = vadd.f32 %v675, %v685
        %vm688 = vcmp.gt.f32.partialorder %v687, 0.0
        %v689 = vmul.f32 %v687, 0.01
        %v690 = vsel %vm688, %v687, %v689
        %v691 = vpack.c.bf16 %v690, %v690
        %v692 = vld [vmem:[%s5] sm:$0xff]
        %v693 = vld [vmem:[%s5 + $0x8] sm:$0xff]
        %v694 = vld [vmem:[%s5 + $0x10] sm:$0xff]
        %v695 = vld [vmem:[%s5 + $0x18] sm:$0xff]
        %v696 = vld [vmem:[%s6] sm:$0xff]
        %v697 = vld [vmem:[%s6 + $0x8] sm:$0xff]
        %v698 = vld [vmem:[%s6 + $0x10] sm:$0xff]
        %v699 = vld [vmem:[%s6 + $0x18] sm:$0xff]
        %v704 = vunpack.c.l.b16 %v696
        %v705 = vunpack.c.h.b16 %v696
        %v706 = vunpack.c.l.b16 %v697
        %v707 = vunpack.c.h.b16 %v697
        %v708 = vunpack.c.l.b16 %v698
        %v709 = vunpack.c.h.b16 %v698
        %v710 = vunpack.c.l.b16 %v699
        %v711 = vunpack.c.h.b16 %v699
        %v712 = vpack.c.b16 %v706, %v704
        %v713 = vpack.c.b16 %v707, %v705
        %v714 = vpack.c.b16 %v710, %v708
        %v715 = vpack.c.b16 %v711, %v709
        %720 = vmatprep.subr.bf16.mxu0 %v713
        %721 = vmatpush1.bf16.msra.mxu0 %v712
        %722 = vmatprep.subr.bf16.mxu0 %v715
        %723 = vmatpush1.bf16.msra.mxu0 %v714
        %724 = vmatprep.subr.bf16.mxu0 0
        %725 = vmatpush1.bf16.msra.mxu0 0
        %726 = vmatprep.subr.bf16.mxu0 0
        %727 = vmatpush1.bf16.msra.mxu0 0
        %728 = vmatprep.subr.bf16.mxu0 0
        %729 = vmatpush1.bf16.msra.mxu0 0
        %730 = vmatprep.subr.bf16.mxu0 0
        %731 = vmatpush1.bf16.msra.mxu0 0
        %732 = vmatprep.subr.bf16.mxu0 0
        %733 = vmatpush1.bf16.msra.mxu0 0
        %734 = vmatprep.subr.bf16.mxu0 0
        %735 = vmatpush1.bf16.msra.mxu0 0
        %736 = vmatprep.subr.bf16.mxu0 0
        %737 = vmatpush1.bf16.msra.mxu0 0
        %738 = vmatprep.subr.bf16.mxu0 0
        %739 = vmatpush1.bf16.msra.mxu0 0
        %740 = vmatprep.subr.bf16.mxu0 0
        %741 = vmatpush1.bf16.msra.mxu0 0
        %742 = vmatprep.subr.bf16.mxu0 0
        %743 = vmatpush1.bf16.msra.mxu0 0
        %744 = vmatprep.subr.bf16.mxu0 0
        %745 = vmatpush1.bf16.msra.mxu0 0
        %746 = vmatprep.subr.bf16.mxu0 0
        %747 = vmatpush1.bf16.msra.mxu0 0
        %748 = vmatprep.subr.bf16.mxu0 0
        %749 = vmatpush1.bf16.msra.mxu0 0
        %750 = vmatprep.subr.bf16.mxu0 0
        %751 = vmatpush1.bf16.msra.mxu0 0
        %752 = vmatprep.mubr.bf16.mxu0 0
        %753 = vmatmul.mubr.bf16.gmra.mrb[0].mxu0 %v583
        %v754 = vpop.f32.mrb[0].mxu0
        %v755 = vadd.f32 0.0, %v754
        %v756 = vpop.f32.mrb[0].mxu0
        %v757 = vadd.f32 0.0, %v756
        %v758 = vpop.f32.mrb[0].mxu0
        %v759 = vpop.f32.mrb[0].mxu0
        %760 = vdwg.mxu0
        %v765 = vunpack.c.l.b16 %v692
        %v766 = vunpack.c.h.b16 %v692
        %v767 = vunpack.c.l.b16 %v693
        %v768 = vunpack.c.h.b16 %v693
        %v769 = vunpack.c.l.b16 %v694
        %v770 = vunpack.c.h.b16 %v694
        %v771 = vunpack.c.l.b16 %v695
        %v772 = vunpack.c.h.b16 %v695
        %v773 = vpack.c.b16 %v767, %v765
        %v774 = vpack.c.b16 %v768, %v766
        %v775 = vpack.c.b16 %v771, %v769
        %v776 = vpack.c.b16 %v772, %v770
        %781 = vmatprep.subr.bf16.mxu0 %v774
        %782 = vmatpush1.bf16.msra.mxu0 %v773
        %783 = vmatprep.subr.bf16.mxu0 %v776
        %784 = vmatpush1.bf16.msra.mxu0 %v775
        %785 = vmatprep.subr.bf16.mxu0 0
        %786 = vmatpush1.bf16.msra.mxu0 0
        %787 = vmatprep.subr.bf16.mxu0 0
        %788 = vmatpush1.bf16.msra.mxu0 0
        %789 = vmatprep.subr.bf16.mxu0 0
        %790 = vmatpush1.bf16.msra.mxu0 0
        %791 = vmatprep.subr.bf16.mxu0 0
        %792 = vmatpush1.bf16.msra.mxu0 0
        %793 = vmatprep.subr.bf16.mxu0 0
        %794 = vmatpush1.bf16.msra.mxu0 0
        %795 = vmatprep.subr.bf16.mxu0 0
        %796 = vmatpush1.bf16.msra.mxu0 0
        %797 = vmatprep.subr.bf16.mxu0 0
        %798 = vmatpush1.bf16.msra.mxu0 0
        %799 = vmatprep.subr.bf16.mxu0 0
        %800 = vmatpush1.bf16.msra.mxu0 0
        %801 = vmatprep.subr.bf16.mxu0 0
        %802 = vmatpush1.bf16.msra.mxu0 0
        %803 = vmatprep.subr.bf16.mxu0 0
        %804 = vmatpush1.bf16.msra.mxu0 0
        %805 = vmatprep.subr.bf16.mxu0 0
        %806 = vmatpush1.bf16.msra.mxu0 0
        %807 = vmatprep.subr.bf16.mxu0 0
        %808 = vmatpush1.bf16.msra.mxu0 0
        %809 = vmatprep.subr.bf16.mxu0 0
        %810 = vmatpush1.bf16.msra.mxu0 0
        %811 = vmatprep.subr.bf16.mxu0 0
        %812 = vmatpush1.bf16.msra.mxu0 0
        %813 = vmatprep.mubr.bf16.mxu0 0
        %814 = vmatmul.mubr.bf16.gmra.mrb[0].mxu0 %v638
        %v815 = vpop.f32.mrb[0].mxu0
        %v816 = vadd.f32 %v755, %v815
        %v817 = vpop.f32.mrb[0].mxu0
        %v818 = vadd.f32 %v757, %v817
        %v819 = vpop.f32.mrb[0].mxu0
        %v820 = vpop.f32.mrb[0].mxu0
        %821 = vdwg.mxu0
        %v822 = vld [vmem:[%s7] sm:$0xff]
        %v823 = vld [vmem:[%s7 + $0x8] sm:$0xff]
        %v824 = vld [vmem:[%s7 + $0x10] sm:$0xff]
        %v825 = vld [vmem:[%s7 + $0x18] sm:$0xff]
        %v826 = vld [vmem:[%s7 + $0x20] sm:$0xff]
        %v827 = vld [vmem:[%s7 + $0x28] sm:$0xff]
        %v828 = vld [vmem:[%s7 + $0x30] sm:$0xff]
        %v829 = vld [vmem:[%s7 + $0x38] sm:$0xff]
        %v830 = vld [vmem:[%s7 + $0x40] sm:$0xff]
        %v831 = vld [vmem:[%s7 + $0x48] sm:$0xff]
        %v832 = vld [vmem:[%s7 + $0x50] sm:$0xff]
        %v833 = vld [vmem:[%s7 + $0x58] sm:$0xff]
        %v834 = vld [vmem:[%s7 + $0x60] sm:$0xff]
        %v835 = vld [vmem:[%s7 + $0x68] sm:$0xff]
        %v836 = vld [vmem:[%s7 + $0x70] sm:$0xff]
        %v837 = vld [vmem:[%s7 + $0x78] sm:$0xff]
        %v854 = vunpack.c.l.b16 %v822
        %v855 = vunpack.c.h.b16 %v822
        %v856 = vunpack.c.l.b16 %v823
        %v857 = vunpack.c.h.b16 %v823
        %v858 = vunpack.c.l.b16 %v824
        %v859 = vunpack.c.h.b16 %v824
        %v860 = vunpack.c.l.b16 %v825
        %v861 = vunpack.c.h.b16 %v825
        %v862 = vunpack.c.l.b16 %v826
        %v863 = vunpack.c.h.b16 %v826
        %v864 = vunpack.c.l.b16 %v827
        %v865 = vunpack.c.h.b16 %v827
        %v866 = vunpack.c.l.b16 %v828
        %v867 = vunpack.c.h.b16 %v828
        %v868 = vunpack.c.l.b16 %v829
        %v869 = vunpack.c.h.b16 %v829
        %v870 = vunpack.c.l.b16 %v830
        %v871 = vunpack.c.h.b16 %v830
        %v872 = vunpack.c.l.b16 %v831
        %v873 = vunpack.c.h.b16 %v831
        %v874 = vunpack.c.l.b16 %v832
        %v875 = vunpack.c.h.b16 %v832
        %v876 = vunpack.c.l.b16 %v833
        %v877 = vunpack.c.h.b16 %v833
        %v878 = vunpack.c.l.b16 %v834
        %v879 = vunpack.c.h.b16 %v834
        %v880 = vunpack.c.l.b16 %v835
        %v881 = vunpack.c.h.b16 %v835
        %v882 = vunpack.c.l.b16 %v836
        %v883 = vunpack.c.h.b16 %v836
        %v884 = vunpack.c.l.b16 %v837
        %v885 = vunpack.c.h.b16 %v837
        %v886 = vpack.c.b16 %v856, %v854
        %v887 = vpack.c.b16 %v857, %v855
        %v888 = vpack.c.b16 %v860, %v858
        %v889 = vpack.c.b16 %v861, %v859
        %v890 = vpack.c.b16 %v864, %v862
        %v891 = vpack.c.b16 %v865, %v863
        %v892 = vpack.c.b16 %v868, %v866
        %v893 = vpack.c.b16 %v869, %v867
        %v894 = vpack.c.b16 %v872, %v870
        %v895 = vpack.c.b16 %v873, %v871
        %v896 = vpack.c.b16 %v876, %v874
        %v897 = vpack.c.b16 %v877, %v875
        %v898 = vpack.c.b16 %v880, %v878
        %v899 = vpack.c.b16 %v881, %v879
        %v900 = vpack.c.b16 %v884, %v882
        %v901 = vpack.c.b16 %v885, %v883
        %918 = vmatprep.subr.bf16.mxu0 %v887
        %919 = vmatpush1.bf16.msra.mxu0 %v886
        %920 = vmatprep.subr.bf16.mxu0 %v889
        %921 = vmatpush1.bf16.msra.mxu0 %v888
        %922 = vmatprep.subr.bf16.mxu0 %v891
        %923 = vmatpush1.bf16.msra.mxu0 %v890
        %924 = vmatprep.subr.bf16.mxu0 %v893
        %925 = vmatpush1.bf16.msra.mxu0 %v892
        %926 = vmatprep.subr.bf16.mxu0 %v895
        %927 = vmatpush1.bf16.msra.mxu0 %v894
        %928 = vmatprep.subr.bf16.mxu0 %v897
        %929 = vmatpush1.bf16.msra.mxu0 %v896
        %930 = vmatprep.subr.bf16.mxu0 %v899
        %931 = vmatpush1.bf16.msra.mxu0 %v898
        %932 = vmatprep.subr.bf16.mxu0 %v901
        %933 = vmatpush1.bf16.msra.mxu0 %v900
        %934 = vmatprep.subr.bf16.mxu0 0
        %935 = vmatpush1.bf16.msra.mxu0 0
        %936 = vmatprep.subr.bf16.mxu0 0
        %937 = vmatpush1.bf16.msra.mxu0 0
        %938 = vmatprep.subr.bf16.mxu0 0
        %939 = vmatpush1.bf16.msra.mxu0 0
        %940 = vmatprep.subr.bf16.mxu0 0
        %941 = vmatpush1.bf16.msra.mxu0 0
        %942 = vmatprep.subr.bf16.mxu0 0
        %943 = vmatpush1.bf16.msra.mxu0 0
        %944 = vmatprep.subr.bf16.mxu0 0
        %945 = vmatpush1.bf16.msra.mxu0 0
        %946 = vmatprep.subr.bf16.mxu0 0
        %947 = vmatpush1.bf16.msra.mxu0 0
        %948 = vmatprep.subr.bf16.mxu0 0
        %949 = vmatpush1.bf16.msra.mxu0 0
        %950 = vmatprep.mubr.bf16.mxu0 0
        %951 = vmatmul.mubr.bf16.gmra.mrb[0].mxu0 %v691
        %v952 = vpop.f32.mrb[0].mxu0
        %v953 = vadd.f32 0.0, %v952
        %v954 = vpop.f32.mrb[0].mxu0
        %v955 = vadd.f32 0.0, %v954
        %v956 = vpop.f32.mrb[0].mxu0
        %v957 = vpop.f32.mrb[0].mxu0
        %958 = vdwg.mxu0
        %v959 = vadd.f32 %v816, %v953
        %v960 = vadd.f32 %v818, %v955
        %v961 = vld [vmem:[%s8] sm:$0x3]
        %v963 = vlaneseq
        %v964 = vshrl.u32 %v963, 7
        %v965 = vsub.s32 0, %v964
        %v966 = vrot.slane %v961, %v965
        %v967 = vlaneseq
        %v968 = vshrl.u32 %v967, 7
        %v969 = vsub.s32 1, %v968
        %v970 = vrot.slane %v961, %v969
        %v973 = vadd.f32 %v959, %v966
        %v974 = vadd.f32 %v960, %v970
        %vm975 = vcmp.gt.f32.partialorder %v973, 0.0
        %vm976 = vcmp.gt.f32.partialorder %v974, 0.0
        %v977 = vmul.f32 %v973, 0.01
        %v978 = vmul.f32 %v974, 0.01
        %v979 = vsel %vm975, %v973, %v977
        %v980 = vsel %vm976, %v974, %v978
        %v981 = vpack.c.bf16 %v979, %v979
        %v982 = vpack.c.bf16 %v980, %v980
        %v983 = vld [vmem:[%s9] sm:$0xf]
        %v984 = vld [vmem:[%s9 + $0x4] sm:$0xf]
        %v985 = vld [vmem:[%s9 + $0x8] sm:$0xf]
        %v986 = vld [vmem:[%s9 + $0xc] sm:$0xf]
        %v987 = vld [vmem:[#allocation10] sm:$0xf]
        %v988 = vld [vmem:[#allocation10 + $0x4] sm:$0xf]
        %v989 = vld [vmem:[#allocation10 + $0x8] sm:$0xf]
        %v990 = vld [vmem:[#allocation10 + $0xc] sm:$0xf]
        %v995 = vunpack.c.l.b16 %v987
        %v996 = vunpack.c.l.b16 %v988
        %v997 = vunpack.c.l.b16 %v989
        %v998 = vunpack.c.l.b16 %v990
        %v999 = vpack.c.b16 %v996, %v995
        %v1000 = vpack.c.b16 %v998, %v997
        %1003 = vmatprep.subr.bf16.mxu0 0
        %1004 = vmatpush1.bf16.msra.mxu0 %v999
        %1005 = vmatprep.subr.bf16.mxu0 0
        %1006 = vmatpush1.bf16.msra.mxu0 %v1000
        %1007 = vmatprep.subr.bf16.mxu0 0
        %1008 = vmatpush1.bf16.msra.mxu0 0
        %1009 = vmatprep.subr.bf16.mxu0 0
        %1010 = vmatpush1.bf16.msra.mxu0 0
        %1011 = vmatprep.subr.bf16.mxu0 0
        %1012 = vmatpush1.bf16.msra.mxu0 0
        %1013 = vmatprep.subr.bf16.mxu0 0
        %1014 = vmatpush1.bf16.msra.mxu0 0
        %1015 = vmatprep.subr.bf16.mxu0 0
        %1016 = vmatpush1.bf16.msra.mxu0 0
        %1017 = vmatprep.subr.bf16.mxu0 0
        %1018 = vmatpush1.bf16.msra.mxu0 0
        %1019 = vmatprep.subr.bf16.mxu0 0
        %1020 = vmatpush1.bf16.msra.mxu0 0
        %1021 = vmatprep.subr.bf16.mxu0 0
        %1022 = vmatpush1.bf16.msra.mxu0 0
        %1023 = vmatprep.subr.bf16.mxu0 0
        %1024 = vmatpush1.bf16.msra.mxu0 0
        %1025 = vmatprep.subr.bf16.mxu0 0
        %1026 = vmatpush1.bf16.msra.mxu0 0
        %1027 = vmatprep.subr.bf16.mxu0 0
        %1028 = vmatpush1.bf16.msra.mxu0 0
        %1029 = vmatprep.subr.bf16.mxu0 0
        %1030 = vmatpush1.bf16.msra.mxu0 0
        %1031 = vmatprep.subr.bf16.mxu0 0
        %1032 = vmatpush1.bf16.msra.mxu0 0
        %1033 = vmatprep.subr.bf16.mxu0 0
        %1034 = vmatpush1.bf16.msra.mxu0 0
        %1035 = vmatprep.mubr.bf16.mxu0 0
        %1036 = vmatmul.mubr.bf16.gmra.mrb[0].mxu0 %v583
        %v1037 = vpop.f32.mrb[0].mxu0
        %v1038 = vadd.f32 0.0, %v1037
        %v1039 = vpop.f32.mrb[0].mxu0
        %v1040 = vpop.f32.mrb[0].mxu0
        %v1041 = vpop.f32.mrb[0].mxu0
        %1042 = vdwg.mxu0
        %v1047 = vunpack.c.l.b16 %v983
        %v1048 = vunpack.c.l.b16 %v984
        %v1049 = vunpack.c.l.b16 %v985
        %v1050 = vunpack.c.l.b16 %v986
        %v1051 = vpack.c.b16 %v1048, %v1047
        %v1052 = vpack.c.b16 %v1050, %v1049
        %1055 = vmatprep.subr.bf16.mxu0 0
        %1056 = vmatpush1.bf16.msra.mxu0 %v1051
        %1057 = vmatprep.subr.bf16.mxu0 0
        %1058 = vmatpush1.bf16.msra.mxu0 %v1052
        %1059 = vmatprep.subr.bf16.mxu0 0
        %1060 = vmatpush1.bf16.msra.mxu0 0
        %1061 = vmatprep.subr.bf16.mxu0 0
        %1062 = vmatpush1.bf16.msra.mxu0 0
        %1063 = vmatprep.subr.bf16.mxu0 0
        %1064 = vmatpush1.bf16.msra.mxu0 0
        %1065 = vmatprep.subr.bf16.mxu0 0
        %1066 = vmatpush1.bf16.msra.mxu0 0
        %1067 = vmatprep.subr.bf16.mxu0 0
        %1068 = vmatpush1.bf16.msra.mxu0 0
        %1069 = vmatprep.subr.bf16.mxu0 0
        %1070 = vmatpush1.bf16.msra.mxu0 0
        %1071 = vmatprep.subr.bf16.mxu0 0
        %1072 = vmatpush1.bf16.msra.mxu0 0
        %1073 = vmatprep.subr.bf16.mxu0 0
        %1074 = vmatpush1.bf16.msra.mxu0 0
        %1075 = vmatprep.subr.bf16.mxu0 0
        %1076 = vmatpush1.bf16.msra.mxu0 0
        %1077 = vmatprep.subr.bf16.mxu0 0
        %1078 = vmatpush1.bf16.msra.mxu0 0
        %1079 = vmatprep.subr.bf16.mxu0 0
        %1080 = vmatpush1.bf16.msra.mxu0 0
        %1081 = vmatprep.subr.bf16.mxu0 0
        %1082 = vmatpush1.bf16.msra.mxu0 0
        %1083 = vmatprep.subr.bf16.mxu0 0
        %1084 = vmatpush1.bf16.msra.mxu0 0
        %1085 = vmatprep.subr.bf16.mxu0 0
        %1086 = vmatpush1.bf16.msra.mxu0 0
        %1087 = vmatprep.mubr.bf16.mxu0 0
        %1088 = vmatmul.mubr.bf16.gmra.mrb[0].mxu0 %v638
        %v1089 = vpop.f32.mrb[0].mxu0
        %v1090 = vadd.f32 %v1038, %v1089
        %v1091 = vpop.f32.mrb[0].mxu0
        %v1092 = vpop.f32.mrb[0].mxu0
        %v1093 = vpop.f32.mrb[0].mxu0
        %1094 = vdwg.mxu0
        %v1095 = vld [vmem:[%s11] sm:$0xf]
        %v1096 = vld [vmem:[%s11 + $0x4] sm:$0xf]
        %v1097 = vld [vmem:[%s11 + $0x8] sm:$0xf]
        %v1098 = vld [vmem:[%s11 + $0xc] sm:$0xf]
        %v1099 = vld [vmem:[%s11 + $0x10] sm:$0xf]
        %v1100 = vld [vmem:[%s11 + $0x14] sm:$0xf]
        %v1101 = vld [vmem:[%s11 + $0x18] sm:$0xf]
        %v1102 = vld [vmem:[%s11 + $0x1c] sm:$0xf]
        %v1103 = vld [vmem:[%s11 + $0x20] sm:$0xf]
        %v1104 = vld [vmem:[%s11 + $0x24] sm:$0xf]
        %v1105 = vld [vmem:[%s11 + $0x28] sm:$0xf]
        %v1106 = vld [vmem:[%s11 + $0x2c] sm:$0xf]
        %v1107 = vld [vmem:[%s11 + $0x30] sm:$0xf]
        %v1108 = vld [vmem:[%s11 + $0x34] sm:$0xf]
        %v1109 = vld [vmem:[%s11 + $0x38] sm:$0xf]
        %v1110 = vld [vmem:[%s11 + $0x3c] sm:$0xf]
        %v1127 = vunpack.c.l.b16 %v1095
        %v1128 = vunpack.c.l.b16 %v1096
        %v1129 = vunpack.c.l.b16 %v1097
        %v1130 = vunpack.c.l.b16 %v1098
        %v1131 = vunpack.c.l.b16 %v1099
        %v1132 = vunpack.c.l.b16 %v1100
        %v1133 = vunpack.c.l.b16 %v1101
        %v1134 = vunpack.c.l.b16 %v1102
        %v1135 = vunpack.c.l.b16 %v1103
        %v1136 = vunpack.c.l.b16 %v1104
        %v1137 = vunpack.c.l.b16 %v1105
        %v1138 = vunpack.c.l.b16 %v1106
        %v1139 = vunpack.c.l.b16 %v1107
        %v1140 = vunpack.c.l.b16 %v1108
        %v1141 = vunpack.c.l.b16 %v1109
        %v1142 = vunpack.c.l.b16 %v1110
        %v1143 = vpack.c.b16 %v1128, %v1127
        %v1144 = vpack.c.b16 %v1130, %v1129
        %v1145 = vpack.c.b16 %v1132, %v1131
        %v1146 = vpack.c.b16 %v1134, %v1133
        %v1147 = vpack.c.b16 %v1136, %v1135
        %v1148 = vpack.c.b16 %v1138, %v1137
        %v1149 = vpack.c.b16 %v1140, %v1139
        %v1150 = vpack.c.b16 %v1142, %v1141
        %1159 = vmatprep.subr.bf16.mxu0 0
        %1160 = vmatpush1.bf16.msra.mxu0 %v1143
        %1161 = vmatprep.subr.bf16.mxu0 0
        %1162 = vmatpush1.bf16.msra.mxu0 %v1144
        %1163 = vmatprep.subr.bf16.mxu0 0
        %1164 = vmatpush1.bf16.msra.mxu0 %v1145
        %1165 = vmatprep.subr.bf16.mxu0 0
        %1166 = vmatpush1.bf16.msra.mxu0 %v1146
        %1167 = vmatprep.subr.bf16.mxu0 0
        %1168 = vmatpush1.bf16.msra.mxu0 %v1147
        %1169 = vmatprep.subr.bf16.mxu0 0
        %1170 = vmatpush1.bf16.msra.mxu0 %v1148
        %1171 = vmatprep.subr.bf16.mxu0 0
        %1172 = vmatpush1.bf16.msra.mxu0 %v1149
        %1173 = vmatprep.subr.bf16.mxu0 0
        %1174 = vmatpush1.bf16.msra.mxu0 %v1150
        %1175 = vmatprep.subr.bf16.mxu0 0
        %1176 = vmatpush1.bf16.msra.mxu0 0
        %1177 = vmatprep.subr.bf16.mxu0 0
        %1178 = vmatpush1.bf16.msra.mxu0 0
        %1179 = vmatprep.subr.bf16.mxu0 0
        %1180 = vmatpush1.bf16.msra.mxu0 0
        %1181 = vmatprep.subr.bf16.mxu0 0
        %1182 = vmatpush1.bf16.msra.mxu0 0
        %1183 = vmatprep.subr.bf16.mxu0 0
        %1184 = vmatpush1.bf16.msra.mxu0 0
        %1185 = vmatprep.subr.bf16.mxu0 0
        %1186 = vmatpush1.bf16.msra.mxu0 0
        %1187 = vmatprep.subr.bf16.mxu0 0
        %1188 = vmatpush1.bf16.msra.mxu0 0
        %1189 = vmatprep.subr.bf16.mxu0 0
        %1190 = vmatpush1.bf16.msra.mxu0 0
        %1191 = vmatprep.mubr.bf16.mxu0 0
        %1192 = vmatmul.mubr.bf16.gmra.mrb[0].mxu0 %v691
        %v1193 = vpop.f32.mrb[0].mxu0
        %v1194 = vadd.f32 0.0, %v1193
        %v1195 = vpop.f32.mrb[0].mxu0
        %v1196 = vpop.f32.mrb[0].mxu0
        %v1197 = vpop.f32.mrb[0].mxu0
        %1198 = vdwg.mxu0
        %v1199 = vadd.f32 %v1090, %v1194
        %v1200 = vld [vmem:[%s12] sm:$0xf]
        %v1201 = vld [vmem:[%s12 + $0x4] sm:$0xf]
        %v1202 = vld [vmem:[%s12 + $0x8] sm:$0xf]
        %v1203 = vld [vmem:[%s12 + $0xc] sm:$0xf]
        %v1204 = vld [vmem:[%s12 + $0x10] sm:$0xf]
        %v1205 = vld [vmem:[%s12 + $0x14] sm:$0xf]
        %v1206 = vld [vmem:[%s12 + $0x18] sm:$0xf]
        %v1207 = vld [vmem:[%s12 + $0x1c] sm:$0xf]
        %v1208 = vld [vmem:[%s12 + $0x20] sm:$0xf]
        %v1209 = vld [vmem:[%s12 + $0x24] sm:$0xf]
        %v1210 = vld [vmem:[%s12 + $0x28] sm:$0xf]
        %v1211 = vld [vmem:[%s12 + $0x2c] sm:$0xf]
        %v1212 = vld [vmem:[%s12 + $0x30] sm:$0xf]
        %v1213 = vld [vmem:[%s12 + $0x34] sm:$0xf]
        %v1214 = vld [vmem:[%s12 + $0x38] sm:$0xf]
        %v1215 = vld [vmem:[%s12 + $0x3c] sm:$0xf]
        %v1216 = vld [vmem:[%s12 + $0x40] sm:$0xf]
        %v1217 = vld [vmem:[%s12 + $0x44] sm:$0xf]
        %v1218 = vld [vmem:[%s12 + $0x48] sm:$0xf]
        %v1219 = vld [vmem:[%s12 + $0x4c] sm:$0xf]
        %v1220 = vld [vmem:[%s12 + $0x50] sm:$0xf]
        %v1221 = vld [vmem:[%s12 + $0x54] sm:$0xf]
        %v1222 = vld [vmem:[%s12 + $0x58] sm:$0xf]
        %v1223 = vld [vmem:[%s12 + $0x5c] sm:$0xf]
        %v1224 = vld [vmem:[%s12 + $0x60] sm:$0xf]
        %v1225 = vld [vmem:[%s12 + $0x64] sm:$0xf]
        %v1226 = vld [vmem:[%s12 + $0x68] sm:$0xf]
        %v1227 = vld [vmem:[%s12 + $0x6c] sm:$0xf]
        %v1228 = vld [vmem:[%s12 + $0x70] sm:$0xf]
        %v1229 = vld [vmem:[%s12 + $0x74] sm:$0xf]
        %v1230 = vld [vmem:[%s12 + $0x78] sm:$0xf]
        %v1231 = vld [vmem:[%s12 + $0x7c] sm:$0xf]
        %v1264 = vunpack.c.l.b16 %v1200
        %v1265 = vunpack.c.l.b16 %v1201
        %v1266 = vunpack.c.l.b16 %v1202
        %v1267 = vunpack.c.l.b16 %v1203
        %v1268 = vunpack.c.l.b16 %v1204
        %v1269 = vunpack.c.l.b16 %v1205
        %v1270 = vunpack.c.l.b16 %v1206
        %v1271 = vunpack.c.l.b16 %v1207
        %v1272 = vunpack.c.l.b16 %v1208
        %v1273 = vunpack.c.l.b16 %v1209
        %v1274 = vunpack.c.l.b16 %v1210
        %v1275 = vunpack.c.l.b16 %v1211
        %v1276 = vunpack.c.l.b16 %v1212
        %v1277 = vunpack.c.l.b16 %v1213
        %v1278 = vunpack.c.l.b16 %v1214
        %v1279 = vunpack.c.l.b16 %v1215
        %v1280 = vunpack.c.l.b16 %v1216
        %v1281 = vunpack.c.l.b16 %v1217
        %v1282 = vunpack.c.l.b16 %v1218
        %v1283 = vunpack.c.l.b16 %v1219
        %v1284 = vunpack.c.l.b16 %v1220
        %v1285 = vunpack.c.l.b16 %v1221
        %v1286 = vunpack.c.l.b16 %v1222
        %v1287 = vunpack.c.l.b16 %v1223
        %v1288 = vunpack.c.l.b16 %v1224
        %v1289 = vunpack.c.l.b16 %v1225
        %v1290 = vunpack.c.l.b16 %v1226
        %v1291 = vunpack.c.l.b16 %v1227
        %v1292 = vunpack.c.l.b16 %v1228
        %v1293 = vunpack.c.l.b16 %v1229
        %v1294 = vunpack.c.l.b16 %v1230
        %v1295 = vunpack.c.l.b16 %v1231
        %v1296 = vpack.c.b16 %v1265, %v1264
        %v1297 = vpack.c.b16 %v1267, %v1266
        %v1298 = vpack.c.b16 %v1269, %v1268
        %v1299 = vpack.c.b16 %v1271, %v1270
        %v1300 = vpack.c.b16 %v1273, %v1272
        %v1301 = vpack.c.b16 %v1275, %v1274
        %v1302 = vpack.c.b16 %v1277, %v1276
        %v1303 = vpack.c.b16 %v1279, %v1278
        %v1304 = vpack.c.b16 %v1281, %v1280
        %v1305 = vpack.c.b16 %v1283, %v1282
        %v1306 = vpack.c.b16 %v1285, %v1284
        %v1307 = vpack.c.b16 %v1287, %v1286
        %v1308 = vpack.c.b16 %v1289, %v1288
        %v1309 = vpack.c.b16 %v1291, %v1290
        %v1310 = vpack.c.b16 %v1293, %v1292
        %v1311 = vpack.c.b16 %v1295, %v1294
        %1328 = vmatprep.subr.bf16.mxu0 0
        %1329 = vmatpush1.bf16.msra.mxu0 %v1296
        %1330 = vmatprep.subr.bf16.mxu0 0
        %1331 = vmatpush1.bf16.msra.mxu0 %v1297
        %1332 = vmatprep.subr.bf16.mxu0 0
        %1333 = vmatpush1.bf16.msra.mxu0 %v1298
        %1334 = vmatprep.subr.bf16.mxu0 0
        %1335 = vmatpush1.bf16.msra.mxu0 %v1299
        %1336 = vmatprep.subr.bf16.mxu0 0
        %1337 = vmatpush1.bf16.msra.mxu0 %v1300
        %1338 = vmatprep.subr.bf16.mxu0 0
        %1339 = vmatpush1.bf16.msra.mxu0 %v1301
        %1340 = vmatprep.subr.bf16.mxu0 0
        %1341 = vmatpush1.bf16.msra.mxu0 %v1302
        %1342 = vmatprep.subr.bf16.mxu0 0
        %1343 = vmatpush1.bf16.msra.mxu0 %v1303
        %1344 = vmatprep.subr.bf16.mxu0 0
        %1345 = vmatpush1.bf16.msra.mxu0 %v1304
        %1346 = vmatprep.subr.bf16.mxu0 0
        %1347 = vmatpush1.bf16.msra.mxu0 %v1305
        %1348 = vmatprep.subr.bf16.mxu0 0
        %1349 = vmatpush1.bf16.msra.mxu0 %v1306
        %1350 = vmatprep.subr.bf16.mxu0 0
        %1351 = vmatpush1.bf16.msra.mxu0 %v1307
        %1352 = vmatprep.subr.bf16.mxu0 0
        %1353 = vmatpush1.bf16.msra.mxu0 %v1308
        %1354 = vmatprep.subr.bf16.mxu0 0
        %1355 = vmatpush1.bf16.msra.mxu0 %v1309
        %1356 = vmatprep.subr.bf16.mxu0 0
        %1357 = vmatpush1.bf16.msra.mxu0 %v1310
        %1358 = vmatprep.subr.bf16.mxu0 0
        %1359 = vmatpush1.bf16.msra.mxu0 %v1311
        %1360 = vmatprep.mubr.bf16.mxu0 %v982
        %1361 = vmatmul.mubr.bf16.gmra.mrb[0].mxu0 %v981
        %v1362 = vpop.f32.mrb[0].mxu0
        %v1363 = vadd.f32 0.0, %v1362
        %v1364 = vpop.f32.mrb[0].mxu0
        %v1365 = vpop.f32.mrb[0].mxu0
        %v1366 = vpop.f32.mrb[0].mxu0
        %1367 = vdwg.mxu0
        %v1368 = vadd.f32 %v1199, %v1363
        %v1369 = vld [vmem:[%s13] sm:$0x1]
        %v1371 = vlaneseq
        %v1372 = vshrl.u32 %v1371, 7
        %v1373 = vsub.s32 0, %v1372
        %v1374 = vrot.slane %v1369, %v1373
        %v1376 = vadd.f32 %v1368, %v1374
        %vm1377 = vcmp.gt.f32.partialorder %v1376, 0.0
        %v1378 = vmul.f32 %v1376, 0.01
        %v1379 = vsel %vm1377, %v1376, %v1378
        %1380 = vst.msk [vmem:[%s551] sm:$0xff] %vm581, %v1379
        %s1381 = sand.u32 %s345, 1
        %s1382 = scalar_lea.sflag [#allocation4], %s1381
        %s1383 = sand.u32 %s345, 1
        %s1384 = smul.addr %s1383, 8
        %s1385 = scalar_lea.vmem [#allocation11], %s1384
        // Predicated region
        $region97: #{_dense_ffn_impl.1} parent=75 // pred_check
          %p1386 = pneg %p355
        $region98: #{_dense_ffn_impl.1} parent=75 // pred_check_branch
          %1388 = sbr.rel (%p1386) target = $region100
        $region99: #{_dense_ffn_impl.1} parent=75 // pred_region
          %s1390 = ssub.s32 128, 128
          %1391 = vsyncadd %s1382, %s1390
          %s1392 = smul.addr %s33, 128
          %s1393 = scalar_lea.hbm %s14, %s1392
          %s1395 = sshll.u32 %s1385, 4
          %s1396 = int_to_ptr.vmem [resolvable:$true] %s1395
          %1398 = dma.vmem_to_hbm [thread:$0]  %s1396, 128, %s1393, %s1382
        $region100: #{_dense_ffn_impl.1} parent=75 // pred_fallthru
          _
      $region76: #{_dense_ffn_impl.1} parent=5 // pred_fallthru
        _
      %p1399 = scmp.le.s32.totalorder 2, %s28
      // Predicated region
      $region101: #{_dense_ffn_impl.1} parent=5 // pred_check
        %p1400 = pneg %p1399
      $region102: #{_dense_ffn_impl.1} parent=5 // pred_check_branch
        %1402 = sbr.rel (%p1400) target = $region104
      $region103: #{_dense_ffn_impl.1} parent=5 // pred_region
        %s1403 = ssub.s32 %s28, 2
        // Predicated region
        $region105: #{_dense_ffn_impl.1} parent=103 // pred_check
          %p1404 = pneg %p361
        $region106: #{_dense_ffn_impl.1} parent=103 // pred_check_branch
          %1406 = sbr.rel (%p1404) target = $region108
        $region107: #{_dense_ffn_impl.1} parent=103 // pred_region
          %s1407 = sand.u32 %s346, 1
          %s1408 = scalar_lea.sflag [#allocation4], %s1407
          %s1409 = sand.u32 %s346, 1
          %s1410 = smul.addr %s1409, 8
          %s1411 = scalar_lea.vmem [#allocation11], %s1410
          %1412 = dma.done %s1408, 128
        $region108: #{_dense_ffn_impl.1} parent=103 // pred_fallthru
          _
      $region104: #{_dense_ffn_impl.1} parent=5 // pred_fallthru
        _
    $region6: #{_dense_ffn_impl.1} parent=1 // loop_footer
      %s32 = sadd.s32 1, %s28
    $region7: #{_dense_ffn_impl.1} parent=1 // loop_footer_branch
      %27 = sbr.rel target = $region3
    $region8: #{_dense_ffn_impl.1} parent=1 // loop_exit
      _
    %1413 = vsyncpa [#allocation3], 1
    %s1414 = scalar_lea.sflag [#allocation3], 1
    %1415 = vsyncpa %s1414, 1
    %1416 = vsyncpa [#allocation6], 1
    %1417 = vsyncpa [#allocation9], 1
    %1418 = vsyncpa [#allocation4], 1
    %s1419 = scalar_lea.sflag [#allocation4], 1
    %1420 = vsyncpa %s1419, 1

</llo_original>
